<compile_context>
chip_gen: v6e
topology: v6e:2x2x1
jax: 0.10.0
libtpu: 0.0.40
codegen_flags: <defaults>
</compile_context>

<pallas_src>
import math

import jax
import jax.numpy as jnp
from jax.experimental import pallas as pl
from jax.experimental.pallas import tpu as pltpu


def _round_up(n, m):
    return (n + m - 1) // m * m


def _make_kernel(const_offs, in_offs, dims):
    """Kernel factory: all slab offsets / sizes are baked in as static ints."""
    (o_freqs, o_be0, o_be1, o_belp, o_bt0, o_bt1, o_bm0, o_bm1, o_bm2p) = const_offs
    (o_x, o_t, o_xs) = in_offs
    (Cin, half, H, E, L, Cout, out_pad) = dims

    def kernel(in_ref, const_ref,
               we0_ref, we1_ref, welp_ref,
               wt0_ref, wt1_ref,
               wm0_ref, wm1_ref, wm2p_ref,
               out_ref):
        f32 = jnp.float32

        def mm(a, w_ref):
            # Cast the activation to the weight storage dtype (bf16 fast MXU
            # path when requested); always accumulate in f32.
            return jnp.dot(a.astype(w_ref.dtype), w_ref[...],
                           preferred_element_type=f32)

        def crow(off, n):
            # Static, 128-lane-aligned slice of the packed constant slab.
            return const_ref[:, off:off + n]

        # One dense load of the packed per-row input slab, sliced statically.
        slab = in_ref[...]
        x = slab[:, o_x:o_x + Cin]
        t = slab[:, o_t:o_t + 1]
        xs = slab[:, o_xs:o_xs + Cin]

        # ---- encoder (EncoderModel, num_layers=2): [Linear+ReLU(+Dropout)] x 2,
        #      Linear -> latent.  Dropout is identity at inference.
        h = jnp.maximum(mm(xs, we0_ref) + crow(o_be0, H), 0.0)
        h = jnp.maximum(mm(h, we1_ref) + crow(o_be1, H), 0.0)
        # Final encoder Linear is zero-padded (wrapper) so `cond` lands at
        # columns [Cout, Cout+L) of the lane-dense output slab.  Store it into
        # the VMEM output block immediately to release its register live range.
        out_ref[...] = mm(h, welp_ref) + crow(o_belp, out_pad)

        # ---- sinusoidal timestep embedding + TimeStyleSeperateEmbed.time_embed
        #      emb = [cos(t*f) | sin(t*f)]; single matmul against the original
        #      (Tch, E) weight (lane concat instead of a weight split).
        args = t * crow(o_freqs, half)                            # (tb, half)
        emb = jnp.concatenate([jnp.cos(args), jnp.sin(args)], axis=1)
        temb = mm(emb, wt0_ref) + crow(o_bt0, E)
        temb = temb * jax.nn.sigmoid(temb)                        # SiLU, f32
        temb = mm(temb, wt1_ref) + crow(o_bt1, E)

        # ---- head MLP on concat([x, time_emb, cond], axis=1)
        #      Single merged matmul (K = Cin+E+L <= 128 -> one MXU pass on all
        #      generations).  Eval-mode BatchNorm1d is folded into the weights.
        cond = out_ref[:, Cout:Cout + L]          # reload small slice from VMEM
        zin = jnp.concatenate([x, temb, cond], axis=1)            # (tb, Cin+E+L)
        z = jnp.maximum(mm(zin, wm0_ref) + crow(o_bm0, H), 0.0)
        z = jnp.maximum(mm(z, wm1_ref) + crow(o_bm1, H), 0.0)

        # pred lands in cols [0, Cout) (wm2_pad/bm2_pad are zero elsewhere),
        # cond stays untouched in cols [Cout, Cout+L).
        out_ref[...] = out_ref[...] + mm(z, wm2p_ref) + crow(o_bm2p, out_pad)

    return kernel


def noise_pred_forward(x, t, x_start, params, *, tb=None,
                       weights_dtype=jnp.float32):
    """Fused inference forward of NoisePredModel2 -> {'pred', 'cond'}."""
    f32 = jnp.float32
    B, Cin = x.shape
    Tch, E = params["wt0"].shape
    half = Tch // 2
    H = params["we0"].shape[1]
    L = params["wel"].shape[1]
    Cout = params["wm2"].shape[1]
    out_pad = _round_up(Cout + L, 128)            # lane-dense output width

    # --- batch tile: multiple of 8 (f32 sublanes), divisor of B.  Default
    #     keeps >= 4 grid steps (megacore sharding on v7x + pipelining) when
    #     the batch allows; on v5e/v6e pass tb=B to minimize per-step overhead.
    if tb is None:
        tb = B
        for cand in (512, 256, 128, 64, 32, 16, 8):
            if B % cand == 0 and B // cand >= 4:
                tb = cand
                break
    assert B % tb == 0, "tb must divide the batch size"
    assert tb == B or tb % 8 == 0, "tb must be a multiple of 8 (or equal B)"
    grid = (B // tb,)

    # --- fold eval-mode BatchNorm1d into the adjacent Linear layers -----------
    eps = 1e-5
    s0 = params["g0"] * jax.lax.rsqrt(params["rv0"] + eps)        # (1, H)
    s1 = params["g1"] * jax.lax.rsqrt(params["rv1"] + eps)
    wm0 = params["wm0"] * s0                       # (Cin+E+L, H), concat order [x|temb|cond]
    bm0 = (params["bm0"] - params["rm0"]) * s0 + params["b0"]
    wm1 = params["wm1"] * s1
    bm1 = (params["bm1"] - params["rm1"]) * s1 + params["b1"]

    # --- pad the two "head" Linears into one shared lane-dense output slab ----
    #     columns [0, Cout)      <- pred  (MLP final Linear)
    #     columns [Cout, Cout+L) <- cond  (encoder final Linear)
    wel_pad = jnp.zeros((H, out_pad), f32).at[:, Cout:Cout + L].set(params["wel"])
    bel_pad = jnp.zeros((1, out_pad), f32).at[:, Cout:Cout + L].set(params["bel"])
    wm2_pad = jnp.zeros((H, out_pad), f32).at[:, :Cout].set(params["wm2"])
    bm2_pad = jnp.zeros((1, out_pad), f32).at[:, :Cout].set(params["bm2"])

    # --- pack every (1, N) constant row into ONE lane-aligned slab ------------
    freqs = jnp.exp(-math.log(10000.0)
                    * jnp.arange(half, dtype=f32) / half).reshape(1, half)
    rows = [freqs, params["be0"], params["be1"], bel_pad,
            params["bt0"], params["bt1"], bm0, bm1, bm2_pad]
    offs, pieces, cur = [], [], 0
    for r in rows:
        r = r.astype(f32).reshape(1, -1)
        n = r.shape[1]
        seg = _round_up(n, 128)
        offs.append(cur)
        pieces.append(jnp.pad(r, ((0, 0), (0, seg - n))))
        cur += seg
    const_slab = jnp.concatenate(pieces, axis=1)                  # (1, cur)

    # --- pack the three per-row inputs into ONE lane-padded slab --------------
    #     x at [0, Cin), t at [Cin], x_start at [Cin+1, Cin+1+Cin)
    o_x, o_t, o_xs = 0, Cin, Cin + 1
    in_pad = _round_up(o_xs + Cin, 128)
    in_rows = jnp.concatenate(
        [x.astype(f32), t.astype(f32).reshape(B, 1), x_start.astype(f32)], axis=1)
    in_slab = jnp.pad(in_rows, ((0, 0), (0, in_pad - in_rows.shape[1])))

    weights = [params["we0"], params["we1"], wel_pad,
               params["wt0"], params["wt1"],
               wm0, wm1, wm2_pad]
    weights = [w.astype(weights_dtype) for w in weights]

    inputs = [in_slab, const_slab] + weights

    kernel = _make_kernel(tuple(offs), (o_x, o_t, o_xs),
                          (Cin, half, H, E, L, Cout, out_pad))

    # --- explicit VMEM budget: double-buffered batch tiles + weights/consts
    #     (grid-invariant, but budgeted at 2x) + headroom.  Tiny either way.
    tile_bytes = 2 * 4 * tb * (in_pad + out_pad)
    wconst_bytes = sum(int(a.size) * a.dtype.itemsize for a in inputs[1:])
    vmem_limit = int(min(max(2 * (tile_bytes + 2 * wconst_bytes) + (4 << 20),
                             16 << 20), 48 << 20))

    def row_spec(feat):
        return pl.BlockSpec((tb, feat), lambda i: (i, 0))

    def full_spec(shape):
        return pl.BlockSpec(tuple(shape), lambda i, _nd=len(shape): (0,) * _nd)

    in_specs = [row_spec(in_pad)] + [full_spec(a.shape) for a in inputs[1:]]
    out_spec = row_spec(out_pad)

    out_slab = pl.pallas_call(
        kernel,
        out_shape=jax.ShapeDtypeStruct((B, out_pad), f32),
        grid_spec=pltpu.PrefetchScalarGridSpec(
            num_scalar_prefetch=0,
            grid=grid,
            in_specs=in_specs,
            out_specs=out_spec,
        ),
        compiler_params=pltpu.CompilerParams(
            dimension_semantics=("parallel",),
            vmem_limit_bytes=vmem_limit,
        ),
    )(*inputs)

    pred = out_slab[:, :Cout]
    cond = out_slab[:, Cout:Cout + L]
    return {"pred": pred, "cond": cond}


def init_params(key, Cin, H, L, E, Tch, Cout):
    keys = jax.random.split(key, 24)

    def w(k, shape, scale=0.1):
        return (scale * jax.random.normal(k, shape)).astype(jnp.float32)

    p = {}
    # encoder: Linear(Cin,H) ReLU Drop, Linear(H,H) ReLU Drop, Linear(H,L)
    p["we0"], p["be0"] = w(keys[0], (Cin, H)), w(keys[1], (1, H))
    p["we1"], p["be1"] = w(keys[2], (H, H)), w(keys[3], (1, H))
    p["wel"], p["bel"] = w(keys[4], (H, L)), w(keys[5], (1, L))
    # time embed: Linear(Tch,E) SiLU Linear(E,E)
    p["wt0"], p["bt0"] = w(keys[6], (Tch, E)), w(keys[7], (1, E))
    p["wt1"], p["bt1"] = w(keys[8], (E, E)), w(keys[9], (1, E))
    # head mlp: Linear(Cin+E+L,H) BN ReLU Linear(H,H) BN ReLU Linear(H,Cout)
    p["wm0"], p["bm0"] = w(keys[10], (Cin + E + L, H)), w(keys[11], (1, H))
    p["wm1"], p["bm1"] = w(keys[12], (H, H)), w(keys[13], (1, H))
    p["wm2"], p["bm2"] = w(keys[14], (H, Cout)), w(keys[15], (1, Cout))
    # BatchNorm1d affine params / running stats (non-trivial, eval mode)
    p["g0"] = 1.0 + w(keys[16], (1, H))
    p["b0"] = w(keys[17], (1, H))
    p["rm0"] = w(keys[18], (1, H))
    p["rv0"] = 0.5 + jnp.abs(w(keys[19], (1, H)))
    p["g1"] = 1.0 + w(keys[20], (1, H))
    p["b1"] = w(keys[21], (1, H))
    p["rm1"] = w(keys[22], (1, H))
    p["rv1"] = 0.5 + jnp.abs(w(keys[23], (1, H)))
    return p


def reference(x, t, x_start, p):
    """Pure-JAX reference mirroring the PyTorch forward (eval mode, un-fused)."""
    h = jnp.maximum(x_start @ p["we0"] + p["be0"], 0.0)
    h = jnp.maximum(h @ p["we1"] + p["be1"], 0.0)
    cond = h @ p["wel"] + p["bel"]

    half = p["wt0"].shape[0] // 2
    freqs = jnp.exp(-math.log(10000.0) * jnp.arange(half, dtype=jnp.float32) / half)
    args = t[:, None].astype(jnp.float32) * freqs[None]
    temb = jnp.concatenate([jnp.cos(args), jnp.sin(args)], axis=1)
    temb = temb @ p["wt0"] + p["bt0"]
    temb = temb * jax.nn.sigmoid(temb)
    temb = temb @ p["wt1"] + p["bt1"]

    eps = 1e-5
    z = jnp.concatenate([x, temb, cond], axis=1) @ p["wm0"] + p["bm0"]
    z = p["g0"] * (z - p["rm0"]) / jnp.sqrt(p["rv0"] + eps) + p["b0"]
    z = jnp.maximum(z, 0.0)
    z = z @ p["wm1"] + p["bm1"]
    z = p["g1"] * (z - p["rm1"]) / jnp.sqrt(p["rv1"] + eps) + p["b1"]
    z = jnp.maximum(z, 0.0)
    pred = z @ p["wm2"] + p["bm2"]
    return {"pred": pred, "cond": cond}


if __name__ == "__main__":
    # Small feature dims (Linear-only module); batch sized so the default tb
    # selection yields a 4-step parallel grid (tb=32) for megacore sharding.
    B, Cin, H, L, E, Tch, Cout = 128, 16, 32, 8, 32, 16, 16

    key = jax.random.PRNGKey(0)
    kx, kxs, kt, kp = jax.random.split(key, 4)
    x = jax.random.normal(kx, (B, Cin), dtype=jnp.float32)
    x_start = jax.random.normal(kxs, (B, Cin), dtype=jnp.float32)
    t = jax.random.randint(kt, (B,), 0, 1000).astype(jnp.float32)

    params = init_params(kp, Cin, H, L, E, Tch, Cout)
    ref = reference(x, t, x_start, params)

    out = noise_pred_forward(x, t, x_start, params)   # f32 weights (default)
    jax.block_until_ready(out)

    assert out["pred"].shape == (B, Cout) and out["cond"].shape == (B, L)
    # Tolerance accounts for TPU default-precision (bf16-pass) matmul rounding
    # in both the fused kernel and the un-fused reference.
    assert jnp.allclose(out["pred"], ref["pred"], atol=5e-3, rtol=5e-3)
    assert jnp.allclose(out["cond"], ref["cond"], atol=5e-3, rtol=5e-3)

    print("KERNEL_OK")
</pallas_src>

<mosaic_0001>
module attributes {stable_mosaic.version = 11 : i64} {
  func.func @kernel(%arg0: i32, %arg1: memref<32x128xf32, #tpu.memory_space<vmem>>, %arg2: memref<1x1152xf32, #tpu.memory_space<vmem>>, %arg3: memref<16x32xf32, #tpu.memory_space<vmem>>, %arg4: memref<32x32xf32, #tpu.memory_space<vmem>>, %arg5: memref<32x128xf32, #tpu.memory_space<vmem>>, %arg6: memref<16x32xf32, #tpu.memory_space<vmem>>, %arg7: memref<32x32xf32, #tpu.memory_space<vmem>>, %arg8: memref<56x32xf32, #tpu.memory_space<vmem>>, %arg9: memref<32x32xf32, #tpu.memory_space<vmem>>, %arg10: memref<32x128xf32, #tpu.memory_space<vmem>>, %arg11: memref<32x128xf32, #tpu.memory_space<vmem>>) attributes {dimension_semantics = [#tpu.dimension_semantics<parallel>], iteration_bounds = array<i64: 4>, scalar_prefetch = 0 : i64, scratch_operands = 0 : i64, tpu.core_type = #tpu.core_type<tc>, window_params = [{transform_indices = @transform_0, window_bounds = array<i64: 32, 128>}, {pipeline_mode = #tpu.pipeline_mode<synchronous>, transform_indices = @transform_1, window_bounds = array<i64: 1, 1152>}, {pipeline_mode = #tpu.pipeline_mode<synchronous>, transform_indices = @transform_2, window_bounds = array<i64: 16, 32>}, {pipeline_mode = #tpu.pipeline_mode<synchronous>, transform_indices = @transform_3, window_bounds = array<i64: 32, 32>}, {pipeline_mode = #tpu.pipeline_mode<synchronous>, transform_indices = @transform_4, window_bounds = array<i64: 32, 128>}, {pipeline_mode = #tpu.pipeline_mode<synchronous>, transform_indices = @transform_5, window_bounds = array<i64: 16, 32>}, {pipeline_mode = #tpu.pipeline_mode<synchronous>, transform_indices = @transform_6, window_bounds = array<i64: 32, 32>}, {pipeline_mode = #tpu.pipeline_mode<synchronous>, transform_indices = @transform_7, window_bounds = array<i64: 56, 32>}, {pipeline_mode = #tpu.pipeline_mode<synchronous>, transform_indices = @transform_8, window_bounds = array<i64: 32, 32>}, {pipeline_mode = #tpu.pipeline_mode<synchronous>, transform_indices = @transform_9, window_bounds = array<i64: 32, 128>}, {transform_indices = @transform_10, window_bounds = array<i64: 32, 128>}]} {
    %c0 = arith.constant 0 : index
    %c0_0 = arith.constant 0 : index
    %0 = vector.load %arg1[%c0, %c0_0] : memref<32x128xf32, #tpu.memory_space<vmem>>, vector<32x128xf32>
    %1 = vector.extract_strided_slice %0 {offsets = [0, 0], sizes = [32, 16], strides = [1, 1]} : vector<32x128xf32> to vector<32x16xf32>
    %2 = vector.extract_strided_slice %0 {offsets = [0, 16], sizes = [32, 1], strides = [1, 1]} : vector<32x128xf32> to vector<32x1xf32>
    %3 = vector.extract_strided_slice %0 {offsets = [0, 17], sizes = [32, 16], strides = [1, 1]} : vector<32x128xf32> to vector<32x16xf32>
    %c0_1 = arith.constant 0 : index
    %c0_2 = arith.constant 0 : index
    %4 = vector.load %arg3[%c0_1, %c0_2] : memref<16x32xf32, #tpu.memory_space<vmem>>, vector<16x32xf32>
    %cst = arith.constant dense<0.000000e+00> : vector<32x32xf32>
    %5 = tpu.matmul %3, %4, %cst {dimension_numbers = #tpu.dot_dimension_numbers<[1], [0], [0], [1], [0, 0, 1, 1], [], []>} : vector<32x16xf32>, vector<16x32xf32>, vector<32x32xf32> -> vector<32x32xf32>
    %c0_3 = arith.constant 0 : index
    %c128 = arith.constant 128 : index
    %6 = vector.load %arg2[%c0_3, %c128] : memref<1x1152xf32, #tpu.memory_space<vmem>>, vector<1x32xf32>
    %7 = vector.broadcast %6 : vector<1x32xf32> to vector<32x32xf32>
    %8 = arith.addf %5, %7 : vector<32x32xf32>
    %cst_4 = arith.constant 0.000000e+00 : f32
    %9 = vector.broadcast %cst_4 : f32 to vector<32x32xf32>
    %10 = arith.maximumf %8, %9 : vector<32x32xf32>
    %c0_5 = arith.constant 0 : index
    %c0_6 = arith.constant 0 : index
    %11 = vector.load %arg4[%c0_5, %c0_6] : memref<32x32xf32, #tpu.memory_space<vmem>>, vector<32x32xf32>
    %cst_7 = arith.constant dense<0.000000e+00> : vector<32x32xf32>
    %12 = tpu.matmul %10, %11, %cst_7 {dimension_numbers = #tpu.dot_dimension_numbers<[1], [0], [0], [1], [0, 0, 1, 1], [], []>} : vector<32x32xf32>, vector<32x32xf32>, vector<32x32xf32> -> vector<32x32xf32>
    %c0_8 = arith.constant 0 : index
    %c256 = arith.constant 256 : index
    %13 = vector.load %arg2[%c0_8, %c256] : memref<1x1152xf32, #tpu.memory_space<vmem>>, vector<1x32xf32>
    %14 = vector.broadcast %13 : vector<1x32xf32> to vector<32x32xf32>
    %15 = arith.addf %12, %14 : vector<32x32xf32>
    %cst_9 = arith.constant 0.000000e+00 : f32
    %16 = vector.broadcast %cst_9 : f32 to vector<32x32xf32>
    %17 = arith.maximumf %15, %16 : vector<32x32xf32>
    %c0_10 = arith.constant 0 : index
    %c0_11 = arith.constant 0 : index
    %18 = vector.load %arg5[%c0_10, %c0_11] : memref<32x128xf32, #tpu.memory_space<vmem>>, vector<32x128xf32>
    %cst_12 = arith.constant dense<0.000000e+00> : vector<32x128xf32>
    %19 = tpu.matmul %17, %18, %cst_12 {dimension_numbers = #tpu.dot_dimension_numbers<[1], [0], [0], [1], [0, 0, 1, 1], [], []>} : vector<32x32xf32>, vector<32x128xf32>, vector<32x128xf32> -> vector<32x128xf32>
    %c0_13 = arith.constant 0 : index
    %c384 = arith.constant 384 : index
    %20 = vector.load %arg2[%c0_13, %c384] : memref<1x1152xf32, #tpu.memory_space<vmem>>, vector<1x128xf32>
    %21 = vector.broadcast %20 : vector<1x128xf32> to vector<32x128xf32>
    %22 = arith.addf %19, %21 : vector<32x128xf32>
    %c0_14 = arith.constant 0 : index
    %c0_15 = arith.constant 0 : index
    %23 = vector.load %arg11[%c0_14, %c0_15] : memref<32x128xf32, #tpu.memory_space<vmem>>, vector<32x128xf32>
    tpu.vector_store %arg11[%c0_14, %c0_15], %22 {strides = array<i32>} : memref<32x128xf32, #tpu.memory_space<vmem>>, vector<32x128xf32>,
    %c0_16 = arith.constant 0 : index
    %c0_17 = arith.constant 0 : index
    %24 = vector.load %arg2[%c0_16, %c0_17] : memref<1x1152xf32, #tpu.memory_space<vmem>>, vector<1x8xf32>
    %25 = vector.broadcast %2 : vector<32x1xf32> to vector<32x8xf32>
    %26 = vector.broadcast %24 : vector<1x8xf32> to vector<32x8xf32>
    %27 = arith.mulf %25, %26 : vector<32x8xf32>
    %28 = math.cos %27 : vector<32x8xf32>
    %29 = math.sin %27 : vector<32x8xf32>
    %30 = tpu.concatenate %28, %29 in 1 : vector<32x8xf32>, vector<32x8xf32> -> vector<32x16xf32>
    %c0_18 = arith.constant 0 : index
    %c0_19 = arith.constant 0 : index
    %31 = vector.load %arg6[%c0_18, %c0_19] : memref<16x32xf32, #tpu.memory_space<vmem>>, vector<16x32xf32>
    %cst_20 = arith.constant dense<0.000000e+00> : vector<32x32xf32>
    %32 = tpu.matmul %30, %31, %cst_20 {dimension_numbers = #tpu.dot_dimension_numbers<[1], [0], [0], [1], [0, 0, 1, 1], [], []>} : vector<32x16xf32>, vector<16x32xf32>, vector<32x32xf32> -> vector<32x32xf32>
    %c0_21 = arith.constant 0 : index
    %c512 = arith.constant 512 : index
    %33 = vector.load %arg2[%c0_21, %c512] : memref<1x1152xf32, #tpu.memory_space<vmem>>, vector<1x32xf32>
    %34 = vector.broadcast %33 : vector<1x32xf32> to vector<32x32xf32>
    %35 = arith.addf %32, %34 : vector<32x32xf32>
    %36 = arith.negf %35 : vector<32x32xf32>
    %37 = math.exp %36 : vector<32x32xf32>
    %cst_22 = arith.constant 1.000000e+00 : f32
    %38 = vector.broadcast %cst_22 : f32 to vector<32x32xf32>
    %39 = arith.addf %38, %37 : vector<32x32xf32>
    %40 = arith.divf %38, %39 : vector<32x32xf32>
    %41 = arith.mulf %35, %40 : vector<32x32xf32>
    %c0_23 = arith.constant 0 : index
    %c0_24 = arith.constant 0 : index
    %42 = vector.load %arg7[%c0_23, %c0_24] : memref<32x32xf32, #tpu.memory_space<vmem>>, vector<32x32xf32>
    %cst_25 = arith.constant dense<0.000000e+00> : vector<32x32xf32>
    %43 = tpu.matmul %41, %42, %cst_25 {dimension_numbers = #tpu.dot_dimension_numbers<[1], [0], [0], [1], [0, 0, 1, 1], [], []>} : vector<32x32xf32>, vector<32x32xf32>, vector<32x32xf32> -> vector<32x32xf32>
    %c0_26 = arith.constant 0 : index
    %c640 = arith.constant 640 : index
    %44 = vector.load %arg2[%c0_26, %c640] : memref<1x1152xf32, #tpu.memory_space<vmem>>, vector<1x32xf32>
    %45 = vector.broadcast %44 : vector<1x32xf32> to vector<32x32xf32>
    %46 = arith.addf %43, %45 : vector<32x32xf32>
    %c0_27 = arith.constant 0 : index
    %c16 = arith.constant 16 : index
    %47 = vector.load %arg11[%c0_27, %c16] : memref<32x128xf32, #tpu.memory_space<vmem>>, vector<32x8xf32>
    %48 = tpu.concatenate %1, %46, %47 in 1 : vector<32x16xf32>, vector<32x32xf32>, vector<32x8xf32> -> vector<32x56xf32>
    %c0_28 = arith.constant 0 : index
    %c0_29 = arith.constant 0 : index
    %49 = vector.load %arg8[%c0_28, %c0_29] : memref<56x32xf32, #tpu.memory_space<vmem>>, vector<56x32xf32>
    %cst_30 = arith.constant dense<0.000000e+00> : vector<32x32xf32>
    %50 = tpu.matmul %48, %49, %cst_30 {dimension_numbers = #tpu.dot_dimension_numbers<[1], [0], [0], [1], [0, 0, 1, 1], [], []>} : vector<32x56xf32>, vector<56x32xf32>, vector<32x32xf32> -> vector<32x32xf32>
    %c0_31 = arith.constant 0 : index
    %c768 = arith.constant 768 : index
    %51 = vector.load %arg2[%c0_31, %c768] : memref<1x1152xf32, #tpu.memory_space<vmem>>, vector<1x32xf32>
    %52 = vector.broadcast %51 : vector<1x32xf32> to vector<32x32xf32>
    %53 = arith.addf %50, %52 : vector<32x32xf32>
    %cst_32 = arith.constant 0.000000e+00 : f32
    %54 = vector.broadcast %cst_32 : f32 to vector<32x32xf32>
    %55 = arith.maximumf %53, %54 : vector<32x32xf32>
    %c0_33 = arith.constant 0 : index
    %c0_34 = arith.constant 0 : index
    %56 = vector.load %arg9[%c0_33, %c0_34] : memref<32x32xf32, #tpu.memory_space<vmem>>, vector<32x32xf32>
    %cst_35 = arith.constant dense<0.000000e+00> : vector<32x32xf32>
    %57 = tpu.matmul %55, %56, %cst_35 {dimension_numbers = #tpu.dot_dimension_numbers<[1], [0], [0], [1], [0, 0, 1, 1], [], []>} : vector<32x32xf32>, vector<32x32xf32>, vector<32x32xf32> -> vector<32x32xf32>
    %c0_36 = arith.constant 0 : index
    %c896 = arith.constant 896 : index
    %58 = vector.load %arg2[%c0_36, %c896] : memref<1x1152xf32, #tpu.memory_space<vmem>>, vector<1x32xf32>
    %59 = vector.broadcast %58 : vector<1x32xf32> to vector<32x32xf32>
    %60 = arith.addf %57, %59 : vector<32x32xf32>
    %cst_37 = arith.constant 0.000000e+00 : f32
    %61 = vector.broadcast %cst_37 : f32 to vector<32x32xf32>
    %62 = arith.maximumf %60, %61 : vector<32x32xf32>
    %c0_38 = arith.constant 0 : index
    %c0_39 = arith.constant 0 : index
    %63 = vector.load %arg11[%c0_38, %c0_39] : memref<32x128xf32, #tpu.memory_space<vmem>>, vector<32x128xf32>
    %c0_40 = arith.constant 0 : index
    %c0_41 = arith.constant 0 : index
    %64 = vector.load %arg10[%c0_40, %c0_41] : memref<32x128xf32, #tpu.memory_space<vmem>>, vector<32x128xf32>
    %cst_42 = arith.constant dense<0.000000e+00> : vector<32x128xf32>
    %65 = tpu.matmul %62, %64, %cst_42 {dimension_numbers = #tpu.dot_dimension_numbers<[1], [0], [0], [1], [0, 0, 1, 1], [], []>} : vector<32x32xf32>, vector<32x128xf32>, vector<32x128xf32> -> vector<32x128xf32>
    %66 = arith.addf %63, %65 : vector<32x128xf32>
    %c0_43 = arith.constant 0 : index
    %c1024 = arith.constant 1024 : index
    %67 = vector.load %arg2[%c0_43, %c1024] : memref<1x1152xf32, #tpu.memory_space<vmem>>, vector<1x128xf32>
    %68 = vector.broadcast %67 : vector<1x128xf32> to vector<32x128xf32>
    %69 = arith.addf %66, %68 : vector<32x128xf32>
    %c0_44 = arith.constant 0 : index
    %c0_45 = arith.constant 0 : index
    %70 = vector.load %arg11[%c0_44, %c0_45] : memref<32x128xf32, #tpu.memory_space<vmem>>, vector<32x128xf32>
    tpu.vector_store %arg11[%c0_44, %c0_45], %69 {strides = array<i32>} : memref<32x128xf32, #tpu.memory_space<vmem>>, vector<32x128xf32>,
    return
  }
  func.func @transform_0(%arg0: i32) -> (i32, i32) {
    %c0_i32 = arith.constant 0 : i32
    %c0_i32_0 = arith.constant 0 : i32
    return %arg0, %c0_i32 : i32, i32
  }
  func.func @transform_1(%arg0: i32) -> (i32, i32) {
    %c0_i32 = arith.constant 0 : i32
    %c0_i32_0 = arith.constant 0 : i32
    %c0_i32_1 = arith.constant 0 : i32
    return %c0_i32, %c0_i32_0 : i32, i32
  }
  func.func @transform_2(%arg0: i32) -> (i32, i32) {
    %c0_i32 = arith.constant 0 : i32
    %c0_i32_0 = arith.constant 0 : i32
    %c0_i32_1 = arith.constant 0 : i32
    return %c0_i32, %c0_i32_0 : i32, i32
  }
  func.func @transform_3(%arg0: i32) -> (i32, i32) {
    %c0_i32 = arith.constant 0 : i32
    %c0_i32_0 = arith.constant 0 : i32
    %c0_i32_1 = arith.constant 0 : i32
    return %c0_i32, %c0_i32_0 : i32, i32
  }
  func.func @transform_4(%arg0: i32) -> (i32, i32) {
    %c0_i32 = arith.constant 0 : i32
    %c0_i32_0 = arith.constant 0 : i32
    %c0_i32_1 = arith.constant 0 : i32
    return %c0_i32, %c0_i32_0 : i32, i32
  }
  func.func @transform_5(%arg0: i32) -> (i32, i32) {
    %c0_i32 = arith.constant 0 : i32
    %c0_i32_0 = arith.constant 0 : i32
    %c0_i32_1 = arith.constant 0 : i32
    return %c0_i32, %c0_i32_0 : i32, i32
  }
  func.func @transform_6(%arg0: i32) -> (i32, i32) {
    %c0_i32 = arith.constant 0 : i32
    %c0_i32_0 = arith.constant 0 : i32
    %c0_i32_1 = arith.constant 0 : i32
    return %c0_i32, %c0_i32_0 : i32, i32
  }
  func.func @transform_7(%arg0: i32) -> (i32, i32) {
    %c0_i32 = arith.constant 0 : i32
    %c0_i32_0 = arith.constant 0 : i32
    %c0_i32_1 = arith.constant 0 : i32
    return %c0_i32, %c0_i32_0 : i32, i32
  }
  func.func @transform_8(%arg0: i32) -> (i32, i32) {
    %c0_i32 = arith.constant 0 : i32
    %c0_i32_0 = arith.constant 0 : i32
    %c0_i32_1 = arith.constant 0 : i32
    return %c0_i32, %c0_i32_0 : i32, i32
  }
  func.func @transform_9(%arg0: i32) -> (i32, i32) {
    %c0_i32 = arith.constant 0 : i32
    %c0_i32_0 = arith.constant 0 : i32
    %c0_i32_1 = arith.constant 0 : i32
    return %c0_i32, %c0_i32_0 : i32, i32
  }
  func.func @transform_10(%arg0: i32) -> (i32, i32) {
    %c0_i32 = arith.constant 0 : i32
    %c0_i32_0 = arith.constant 0 : i32
    return %arg0, %c0_i32 : i32, i32
  }
}

</mosaic_0001>

<llo_original>
// kernel: tpu_custom_call.1
$region0: #{tpu_custom_call.1}
  #allocation0 [shape = 'u32[]', space=smem, size = 0x4, offset = 0x4, fixed_abs, tag = 'smem constant byte address 0x4 - core index']
  #allocation1 [shape = 'u32[144,128]{1,0:T(1,128)}', space=vmem, size = 0x12000, scoped, tag = 'internal scratch']
  %s0 = inlined_call_operand.hbm [shape: f32[128,128], index: 0, kind: input, shape index: {}]
  %s1 = inlined_call_operand.hbm [shape: f32[1,1152], index: 1, kind: input, shape index: {}]
  %s2 = inlined_call_operand.hbm [shape: f32[16,32], index: 2, kind: input, shape index: {}]
  %s3 = inlined_call_operand.vmem [shape: f32[32,32], index: 3, kind: input, shape index: {}]
  %s4 = inlined_call_operand.vmem [shape: f32[32,128], index: 4, kind: input, shape index: {}]
  %s5 = inlined_call_operand.hbm [shape: f32[16,32], index: 5, kind: input, shape index: {}]
  %s6 = inlined_call_operand.vmem [shape: f32[32,32], index: 6, kind: input, shape index: {}]
  %s7 = inlined_call_operand.vmem [shape: f32[56,32], index: 7, kind: input, shape index: {}]
  %s8 = inlined_call_operand.hbm [shape: f32[32,32], index: 8, kind: input, shape index: {}]
  %s9 = inlined_call_operand.hbm [shape: f32[32,128], index: 9, kind: input, shape index: {}]
  %s10 = inlined_call_operand.hbm [shape: f32[128,128], index: 10, kind: output, shape index: {}]
  %s11 = sld [smem:[#allocation0]]
  $region97: #{tpu_custom_call.1} parent=0
    _
  %s13 = ssub.s32 1, %s11
  %s14 = scalar_select 0, %s13, %s11
  $region1: #{tpu_custom_call.1} parent=0
    #allocation2 [shape = 'u8[32768]{0}', space=vmem, size = 0x8000, scoped, tag = 'input window, operand 0']
    #allocation3 [shape = 's32[2]{0}', space=sflag, size = 0x8, scoped, tag = 'scoped memory for tpu_custom_call.1']
    #allocation4 [shape = 's32[2]{0}', space=sflag, size = 0x8, scoped, tag = 'scoped memory for tpu_custom_call.1']
    #allocation5 [shape = 'u8[4608]{0}', space=vmem, size = 0x1400, scoped, tag = 'input window, operand 1, single buffered']
    #allocation6 [shape = 's32[1]{0}', space=sflag, size = 0x4, scoped, tag = 'scoped memory for tpu_custom_call.1']
    #allocation7 [shape = 'u8[8192]{0}', space=vmem, size = 0x2000, scoped, tag = 'input window, operand 2, single buffered']
    #allocation8 [shape = 'u8[8192]{0}', space=vmem, size = 0x2000, scoped, tag = 'input window, operand 5, single buffered']
    #allocation9 [shape = 's32[1]{0}', space=sflag, size = 0x4, scoped, tag = 'scoped memory for tpu_custom_call.1']
    #allocation10 [shape = 'u8[16384]{0}', space=vmem, size = 0x4000, scoped, tag = 'input window, operand 8, single buffered']
    #allocation11 [shape = 'u8[16384]{0}', space=vmem, size = 0x4000, scoped, tag = 'input window, operand 9, single buffered']
    #allocation12 [shape = 's32[1]{0}', space=sflag, size = 0x4, scoped, tag = 'scoped memory for tpu_custom_call.1']
    #allocation13 [shape = 'u8[32768]{0}', space=vmem, size = 0x8000, scoped, tag = 'output window, operand 0']
    %15 = vsyncpa [#allocation3], 0
    %s16 = scalar_lea.sflag [#allocation3], 1
    %17 = vsyncpa %s16, 0
    %18 = vsyncpa [#allocation6], 0
    %19 = vsyncpa [#allocation9], 0
    %20 = vsyncpa [#allocation12], 0
    %21 = vsyncpa [#allocation4], 0
    %s22 = scalar_lea.sflag [#allocation4], 1
    %23 = vsyncpa %s22, 0
    loop: start=0, step=1, limit=6
    $region2: #{tpu_custom_call.1} parent=1 // loop_pre_header
      _
    $region3: #{tpu_custom_call.1} parent=1 // loop_header
      %s25 = sphi 0, %s29
      %p26 = scmp.ge.s32.totalorder %s25, 6
      %s35 = sphi 0, %s37
      %s38 = sphi 0, %s35
      %s39 = sphi 0, %s38
      %s55 = sphi 0, %s39
      %s59 = sphi 0, %s59
      %s61 = sphi 0, %s59
      %s62 = sphi 0, %s61
      %s76 = sphi 0, %s62
      %s80 = sphi 0, %s80
      %s82 = sphi 0, %s80
      %s83 = sphi 0, %s82
      %s97 = sphi 0, %s83
      %s101 = sphi 0, %s101
      %s103 = sphi 0, %s101
      %s104 = sphi 0, %s103
      %s118 = sphi 0, %s104
      %s122 = sphi 0, %s122
      %s124 = sphi 0, %s122
      %s125 = sphi 0, %s124
      %s139 = sphi 0, %s125
      %s143 = sphi 0, %s143
      %s145 = sphi 0, %s143
      %s146 = sphi 0, %s145
      %s160 = sphi 0, %s146
      %s164 = sphi 0, %s164
      %s166 = sphi 0, %s164
      %s167 = sphi 0, %s166
      %s181 = sphi 0, %s167
      %s185 = sphi 0, %s185
      %s187 = sphi 0, %s185
      %s188 = sphi 0, %s187
      %s202 = sphi 0, %s188
      %s206 = sphi 0, %s206
      %s208 = sphi 0, %s206
      %s209 = sphi 0, %s208
      %s223 = sphi 0, %s209
      %s227 = sphi 0, %s227
      %s229 = sphi 0, %s227
      %s230 = sphi 0, %s229
      %s244 = sphi 0, %s230
      %s250 = sphi 0, %s252
      %s253 = sphi 0, %s250
      %s254 = sphi 0, %s253
      %s270 = sphi 0, %s254
    $region4: #{tpu_custom_call.1} parent=1 // loop_header_branch
      %28 = sbr.rel (%p26) target = $region8
    $region5: #{tpu_custom_call.1} parent=1 // loop_body
      %s30 = ssub.s32 %s25, 1
      %s31 = ssub.s32 %s25, 2
      %s32 = sadd.s32 %s25, 1
      %s33 = ssub.s32 %s25, %s32
      %p34 = scmp.eq.s32.totalorder %s33, 0
      %s36 = sadd.s32 %s35, 1
      %s37 = scalar_select %p34, %s35, %s36
      %p40 = pneg %p34
      %p41 = scmp.eq.s32.totalorder %s25, 3
      %p42 = por %p40, %p41
      %p43 = scmp.ne.s32.totalorder %s35, %s38
      %p44 = scmp.eq.s32.totalorder %s25, 0
      %p45 = por %p43, %p44
      %p46 = scmp.ne.s32.totalorder %s35, %s38
      %p47 = scmp.eq.s32.totalorder %s30, 3
      %p48 = por %p46, %p47
      %p49 = scmp.ne.s32.totalorder %s38, %s39
      %p50 = scmp.eq.s32.totalorder %s30, 0
      %p51 = por %p49, %p50
      %p52 = scmp.ne.s32.totalorder %s38, %s39
      %p53 = scmp.eq.s32.totalorder %s31, 3
      %p54 = por %p52, %p53
      %p56 = scmp.ne.s32.totalorder %s39, %s55
      %p57 = scmp.eq.s32.totalorder %s31, 0
      %p58 = por %p56, %p57
      %s60 = sadd.s32 %s59, 1
      %p63 = scmp.eq.s32.totalorder %s25, 3
      %p64 = scmp.ne.s32.totalorder %s59, %s61
      %p65 = scmp.eq.s32.totalorder %s25, 0
      %p66 = por %p64, %p65
      %p67 = scmp.ne.s32.totalorder %s59, %s61
      %p68 = scmp.eq.s32.totalorder %s30, 3
      %p69 = por %p67, %p68
      %p70 = scmp.ne.s32.totalorder %s61, %s62
      %p71 = scmp.eq.s32.totalorder %s30, 0
      %p72 = por %p70, %p71
      %p73 = scmp.ne.s32.totalorder %s61, %s62
      %p74 = scmp.eq.s32.totalorder %s31, 3
      %p75 = por %p73, %p74
      %p77 = scmp.ne.s32.totalorder %s62, %s76
      %p78 = scmp.eq.s32.totalorder %s31, 0
      %p79 = por %p77, %p78
      %s81 = sadd.s32 %s80, 1
      %p84 = scmp.eq.s32.totalorder %s25, 3
      %p85 = scmp.ne.s32.totalorder %s80, %s82
      %p86 = scmp.eq.s32.totalorder %s25, 0
      %p87 = por %p85, %p86
      %p88 = scmp.ne.s32.totalorder %s80, %s82
      %p89 = scmp.eq.s32.totalorder %s30, 3
      %p90 = por %p88, %p89
      %p91 = scmp.ne.s32.totalorder %s82, %s83
      %p92 = scmp.eq.s32.totalorder %s30, 0
      %p93 = por %p91, %p92
      %p94 = scmp.ne.s32.totalorder %s82, %s83
      %p95 = scmp.eq.s32.totalorder %s31, 3
      %p96 = por %p94, %p95
      %p98 = scmp.ne.s32.totalorder %s83, %s97
      %p99 = scmp.eq.s32.totalorder %s31, 0
      %p100 = por %p98, %p99
      %s102 = sadd.s32 %s101, 1
      %p105 = scmp.eq.s32.totalorder %s25, 3
      %p106 = scmp.ne.s32.totalorder %s101, %s103
      %p107 = scmp.eq.s32.totalorder %s25, 0
      %p108 = por %p106, %p107
      %p109 = scmp.ne.s32.totalorder %s101, %s103
      %p110 = scmp.eq.s32.totalorder %s30, 3
      %p111 = por %p109, %p110
      %p112 = scmp.ne.s32.totalorder %s103, %s104
      %p113 = scmp.eq.s32.totalorder %s30, 0
      %p114 = por %p112, %p113
      %p115 = scmp.ne.s32.totalorder %s103, %s104
      %p116 = scmp.eq.s32.totalorder %s31, 3
      %p117 = por %p115, %p116
      %p119 = scmp.ne.s32.totalorder %s104, %s118
      %p120 = scmp.eq.s32.totalorder %s31, 0
      %p121 = por %p119, %p120
      %s123 = sadd.s32 %s122, 1
      %p126 = scmp.eq.s32.totalorder %s25, 3
      %p127 = scmp.ne.s32.totalorder %s122, %s124
      %p128 = scmp.eq.s32.totalorder %s25, 0
      %p129 = por %p127, %p128
      %p130 = scmp.ne.s32.totalorder %s122, %s124
      %p131 = scmp.eq.s32.totalorder %s30, 3
      %p132 = por %p130, %p131
      %p133 = scmp.ne.s32.totalorder %s124, %s125
      %p134 = scmp.eq.s32.totalorder %s30, 0
      %p135 = por %p133, %p134
      %p136 = scmp.ne.s32.totalorder %s124, %s125
      %p137 = scmp.eq.s32.totalorder %s31, 3
      %p138 = por %p136, %p137
      %p140 = scmp.ne.s32.totalorder %s125, %s139
      %p141 = scmp.eq.s32.totalorder %s31, 0
      %p142 = por %p140, %p141
      %s144 = sadd.s32 %s143, 1
      %p147 = scmp.eq.s32.totalorder %s25, 3
      %p148 = scmp.ne.s32.totalorder %s143, %s145
      %p149 = scmp.eq.s32.totalorder %s25, 0
      %p150 = por %p148, %p149
      %p151 = scmp.ne.s32.totalorder %s143, %s145
      %p152 = scmp.eq.s32.totalorder %s30, 3
      %p153 = por %p151, %p152
      %p154 = scmp.ne.s32.totalorder %s145, %s146
      %p155 = scmp.eq.s32.totalorder %s30, 0
      %p156 = por %p154, %p155
      %p157 = scmp.ne.s32.totalorder %s145, %s146
      %p158 = scmp.eq.s32.totalorder %s31, 3
      %p159 = por %p157, %p158
      %p161 = scmp.ne.s32.totalorder %s146, %s160
      %p162 = scmp.eq.s32.totalorder %s31, 0
      %p163 = por %p161, %p162
      %s165 = sadd.s32 %s164, 1
      %p168 = scmp.eq.s32.totalorder %s25, 3
      %p169 = scmp.ne.s32.totalorder %s164, %s166
      %p170 = scmp.eq.s32.totalorder %s25, 0
      %p171 = por %p169, %p170
      %p172 = scmp.ne.s32.totalorder %s164, %s166
      %p173 = scmp.eq.s32.totalorder %s30, 3
      %p174 = por %p172, %p173
      %p175 = scmp.ne.s32.totalorder %s166, %s167
      %p176 = scmp.eq.s32.totalorder %s30, 0
      %p177 = por %p175, %p176
      %p178 = scmp.ne.s32.totalorder %s166, %s167
      %p179 = scmp.eq.s32.totalorder %s31, 3
      %p180 = por %p178, %p179
      %p182 = scmp.ne.s32.totalorder %s167, %s181
      %p183 = scmp.eq.s32.totalorder %s31, 0
      %p184 = por %p182, %p183
      %s186 = sadd.s32 %s185, 1
      %p189 = scmp.eq.s32.totalorder %s25, 3
      %p190 = scmp.ne.s32.totalorder %s185, %s187
      %p191 = scmp.eq.s32.totalorder %s25, 0
      %p192 = por %p190, %p191
      %p193 = scmp.ne.s32.totalorder %s185, %s187
      %p194 = scmp.eq.s32.totalorder %s30, 3
      %p195 = por %p193, %p194
      %p196 = scmp.ne.s32.totalorder %s187, %s188
      %p197 = scmp.eq.s32.totalorder %s30, 0
      %p198 = por %p196, %p197
      %p199 = scmp.ne.s32.totalorder %s187, %s188
      %p200 = scmp.eq.s32.totalorder %s31, 3
      %p201 = por %p199, %p200
      %p203 = scmp.ne.s32.totalorder %s188, %s202
      %p204 = scmp.eq.s32.totalorder %s31, 0
      %p205 = por %p203, %p204
      %s207 = sadd.s32 %s206, 1
      %p210 = scmp.eq.s32.totalorder %s25, 3
      %p211 = scmp.ne.s32.totalorder %s206, %s208
      %p212 = scmp.eq.s32.totalorder %s25, 0
      %p213 = por %p211, %p212
      %p214 = scmp.ne.s32.totalorder %s206, %s208
      %p215 = scmp.eq.s32.totalorder %s30, 3
      %p216 = por %p214, %p215
      %p217 = scmp.ne.s32.totalorder %s208, %s209
      %p218 = scmp.eq.s32.totalorder %s30, 0
      %p219 = por %p217, %p218
      %p220 = scmp.ne.s32.totalorder %s208, %s209
      %p221 = scmp.eq.s32.totalorder %s31, 3
      %p222 = por %p220, %p221
      %p224 = scmp.ne.s32.totalorder %s209, %s223
      %p225 = scmp.eq.s32.totalorder %s31, 0
      %p226 = por %p224, %p225
      %s228 = sadd.s32 %s227, 1
      %p231 = scmp.eq.s32.totalorder %s25, 3
      %p232 = scmp.ne.s32.totalorder %s227, %s229
      %p233 = scmp.eq.s32.totalorder %s25, 0
      %p234 = por %p232, %p233
      %p235 = scmp.ne.s32.totalorder %s227, %s229
      %p236 = scmp.eq.s32.totalorder %s30, 3
      %p237 = por %p235, %p236
      %p238 = scmp.ne.s32.totalorder %s229, %s230
      %p239 = scmp.eq.s32.totalorder %s30, 0
      %p240 = por %p238, %p239
      %p241 = scmp.ne.s32.totalorder %s229, %s230
      %p242 = scmp.eq.s32.totalorder %s31, 3
      %p243 = por %p241, %p242
      %p245 = scmp.ne.s32.totalorder %s230, %s244
      %p246 = scmp.eq.s32.totalorder %s31, 0
      %p247 = por %p245, %p246
      %s248 = ssub.s32 %s25, %s32
      %p249 = scmp.eq.s32.totalorder %s248, 0
      %s251 = sadd.s32 %s250, 1
      %s252 = scalar_select %p249, %s250, %s251
      %p255 = pneg %p249
      %p256 = scmp.eq.s32.totalorder %s25, 3
      %p257 = por %p255, %p256
      %p258 = scmp.ne.s32.totalorder %s250, %s253
      %p259 = scmp.eq.s32.totalorder %s25, 0
      %p260 = por %p258, %p259
      %p261 = scmp.ne.s32.totalorder %s250, %s253
      %p262 = scmp.eq.s32.totalorder %s30, 3
      %p263 = por %p261, %p262
      %p264 = scmp.ne.s32.totalorder %s253, %s254
      %p265 = scmp.eq.s32.totalorder %s30, 0
      %p266 = por %p264, %p265
      %p267 = scmp.ne.s32.totalorder %s253, %s254
      %p268 = scmp.eq.s32.totalorder %s31, 3
      %p269 = por %p267, %p268
      %p271 = scmp.ne.s32.totalorder %s254, %s270
      %p272 = scmp.eq.s32.totalorder %s31, 0
      %p273 = por %p271, %p272
      %p274 = scmp.le.s32.totalorder 1, %s25
      %p275 = scmp.lt.s32.totalorder %s25, 5
      %p276 = pnand %p274, %p275
      %p277 = pneg %p276
      // Predicated region
      $region9: #{tpu_custom_call.1} parent=5 // pred_check
        _
      $region10: #{tpu_custom_call.1} parent=5 // pred_check_branch
        %279 = sbr.rel (%p276) target = $region12
      $region11: #{tpu_custom_call.1} parent=5 // pred_region
        %s280 = ssub.s32 %s25, 1
        // Predicated region
        $region13: #{tpu_custom_call.1} parent=11 // pred_check
          %p281 = pneg %p72
        $region14: #{tpu_custom_call.1} parent=11 // pred_check_branch
          %283 = sbr.rel (%p281) target = $region16
        $region15: #{tpu_custom_call.1} parent=11 // pred_region
          %s285 = ssub.s32 144, 144
          %286 = vsyncadd [#allocation6], %s285
          %s288 = sshll.u32 [#allocation5], 4
          %s289 = int_to_ptr.vmem [resolvable:$true] %s288
          %291 = dma.hbm_to_vmem [thread:$0]  %s1, 144, %s289, [#allocation6]
        $region16: #{tpu_custom_call.1} parent=11 // pred_fallthru
          _
        // Predicated region
        $region17: #{tpu_custom_call.1} parent=11 // pred_check
          %p292 = pneg %p93
        $region18: #{tpu_custom_call.1} parent=11 // pred_check_branch
          %294 = sbr.rel (%p292) target = $region20
        $region19: #{tpu_custom_call.1} parent=11 // pred_region
          %s296 = ssub.s32 256, 256
          %297 = vsyncadd [#allocation6], %s296
          %s298 = sshll.u32 [#allocation7], 4
          %s299 = int_to_ptr.vmem [resolvable:$true] %s298
          %304 = dma.hbm_to_vmem [thread:$0]  %s2, 256, %s299, [#allocation6], 128, 128, 8
        $region20: #{tpu_custom_call.1} parent=11 // pred_fallthru
          _
        // Predicated region
        $region21: #{tpu_custom_call.1} parent=11 // pred_check
          %p305 = pneg %p114
        $region22: #{tpu_custom_call.1} parent=11 // pred_check_branch
          %307 = sbr.rel (%p305) target = $region24
        $region23: #{tpu_custom_call.1} parent=11 // pred_region
          _
        $region24: #{tpu_custom_call.1} parent=11 // pred_fallthru
          _
        // Predicated region
        $region25: #{tpu_custom_call.1} parent=11 // pred_check
          %p308 = pneg %p135
        $region26: #{tpu_custom_call.1} parent=11 // pred_check_branch
          %310 = sbr.rel (%p308) target = $region28
        $region27: #{tpu_custom_call.1} parent=11 // pred_region
          _
        $region28: #{tpu_custom_call.1} parent=11 // pred_fallthru
          _
        // Predicated region
        $region29: #{tpu_custom_call.1} parent=11 // pred_check
          %p311 = pneg %p156
        $region30: #{tpu_custom_call.1} parent=11 // pred_check_branch
          %313 = sbr.rel (%p311) target = $region32
        $region31: #{tpu_custom_call.1} parent=11 // pred_region
          %s315 = ssub.s32 256, 256
          %316 = vsyncadd [#allocation9], %s315
          %s317 = sshll.u32 [#allocation8], 4
          %s318 = int_to_ptr.vmem [resolvable:$true] %s317
          %323 = dma.hbm_to_vmem [thread:$0]  %s5, 256, %s318, [#allocation9], 128, 128, 8
        $region32: #{tpu_custom_call.1} parent=11 // pred_fallthru
          _
        // Predicated region
        $region33: #{tpu_custom_call.1} parent=11 // pred_check
          %p324 = pneg %p177
        $region34: #{tpu_custom_call.1} parent=11 // pred_check_branch
          %326 = sbr.rel (%p324) target = $region36
        $region35: #{tpu_custom_call.1} parent=11 // pred_region
          _
        $region36: #{tpu_custom_call.1} parent=11 // pred_fallthru
          _
        // Predicated region
        $region37: #{tpu_custom_call.1} parent=11 // pred_check
          %p327 = pneg %p198
        $region38: #{tpu_custom_call.1} parent=11 // pred_check_branch
          %329 = sbr.rel (%p327) target = $region40
        $region39: #{tpu_custom_call.1} parent=11 // pred_region
          _
        $region40: #{tpu_custom_call.1} parent=11 // pred_fallthru
          _
        // Predicated region
        $region41: #{tpu_custom_call.1} parent=11 // pred_check
          %p330 = pneg %p219
        $region42: #{tpu_custom_call.1} parent=11 // pred_check_branch
          %332 = sbr.rel (%p330) target = $region44
        $region43: #{tpu_custom_call.1} parent=11 // pred_region
          %s334 = ssub.s32 512, 512
          %335 = vsyncadd [#allocation9], %s334
          %s336 = sshll.u32 [#allocation10], 4
          %s337 = int_to_ptr.vmem [resolvable:$true] %s336
          %342 = dma.hbm_to_vmem [thread:$0]  %s8, 512, %s337, [#allocation9], 128, 128, 8
        $region44: #{tpu_custom_call.1} parent=11 // pred_fallthru
          _
        // Predicated region
        $region45: #{tpu_custom_call.1} parent=11 // pred_check
          %p343 = pneg %p240
        $region46: #{tpu_custom_call.1} parent=11 // pred_check_branch
          %345 = sbr.rel (%p343) target = $region48
        $region47: #{tpu_custom_call.1} parent=11 // pred_region
          %s347 = ssub.s32 512, 512
          %348 = vsyncadd [#allocation12], %s347
          %s349 = sshll.u32 [#allocation11], 4
          %s350 = int_to_ptr.vmem [resolvable:$true] %s349
          %355 = dma.hbm_to_vmem [thread:$0]  %s9, 512, %s350, [#allocation12], 128, 128, 8
        $region48: #{tpu_custom_call.1} parent=11 // pred_fallthru
          _
      $region12: #{tpu_custom_call.1} parent=5 // pred_fallthru
        _
      %p356 = scmp.lt.s32.totalorder %s25, 4
      // Predicated region
      $region49: #{tpu_custom_call.1} parent=5 // pred_check
        %p357 = pneg %p356
      $region50: #{tpu_custom_call.1} parent=5 // pred_check_branch
        %359 = sbr.rel (%p357) target = $region52
      $region51: #{tpu_custom_call.1} parent=5 // pred_region
        // Predicated region
        $region53: #{tpu_custom_call.1} parent=51 // pred_check
          %p360 = pneg %p45
        $region54: #{tpu_custom_call.1} parent=51 // pred_check_branch
          %362 = sbr.rel (%p360) target = $region56
        $region55: #{tpu_custom_call.1} parent=51 // pred_region
          %s363 = sand.u32 %s35, 1
          %s364 = scalar_lea.sflag [#allocation3], %s363
          %s365 = sand.u32 %s35, 1
          %s366 = smul.addr %s365, 32
          %s367 = scalar_lea.vmem [#allocation2], %s366
          %s368 = smul.u32 4, %s25
          %s370 = ssub.s32 512, 512
          %371 = vsyncadd %s364, %s370
          %s372 = smul.addr %s368, 128
          %s373 = scalar_lea.hbm %s0, %s372
          %s374 = sshll.u32 %s367, 4
          %s375 = int_to_ptr.vmem [resolvable:$true] %s374
          %380 = dma.hbm_to_vmem [thread:$0]  %s373, 512, %s375, %s364, 128, 128, 8
        $region56: #{tpu_custom_call.1} parent=51 // pred_fallthru
          _
      $region52: #{tpu_custom_call.1} parent=5 // pred_fallthru
        _
      %p381 = scmp.le.s32.totalorder 1, %s25
      %p382 = scmp.lt.s32.totalorder %s25, 5
      %p383 = pnand %p381, %p382
      %p384 = pneg %p383
      // Predicated region
      $region57: #{tpu_custom_call.1} parent=5 // pred_check
        _
      $region58: #{tpu_custom_call.1} parent=5 // pred_check_branch
        %386 = sbr.rel (%p383) target = $region60
      $region59: #{tpu_custom_call.1} parent=5 // pred_region
        %s387 = ssub.s32 %s25, 1
        %s388 = sand.u32 %s38, 1
        %s389 = scalar_lea.sflag [#allocation3], %s388
        %s390 = sand.u32 %s38, 1
        %s391 = smul.addr %s390, 32
        %s392 = scalar_lea.vmem [#allocation2], %s391
        // Predicated region
        $region61: #{tpu_custom_call.1} parent=59 // pred_check
          %p393 = pneg %p51
        $region62: #{tpu_custom_call.1} parent=59 // pred_check_branch
          %395 = sbr.rel (%p393) target = $region64
        $region63: #{tpu_custom_call.1} parent=59 // pred_region
          %396 = dma.done %s389, 512
        $region64: #{tpu_custom_call.1} parent=59 // pred_fallthru
          _
        // Predicated region
        $region65: #{tpu_custom_call.1} parent=59 // pred_check
          %p397 = pneg %p72
        $region66: #{tpu_custom_call.1} parent=59 // pred_check_branch
          %399 = sbr.rel (%p397) target = $region68
        $region67: #{tpu_custom_call.1} parent=59 // pred_region
          %400 = dma.done [#allocation6], 144
        $region68: #{tpu_custom_call.1} parent=59 // pred_fallthru
          _
        // Predicated region
        $region69: #{tpu_custom_call.1} parent=59 // pred_check
          %p401 = pneg %p93
        $region70: #{tpu_custom_call.1} parent=59 // pred_check_branch
          %403 = sbr.rel (%p401) target = $region72
        $region71: #{tpu_custom_call.1} parent=59 // pred_region
          %404 = dma.done [#allocation6], 256
        $region72: #{tpu_custom_call.1} parent=59 // pred_fallthru
          _
        // Predicated region
        $region73: #{tpu_custom_call.1} parent=59 // pred_check
          %p405 = pneg %p156
        $region74: #{tpu_custom_call.1} parent=59 // pred_check_branch
          %407 = sbr.rel (%p405) target = $region76
        $region75: #{tpu_custom_call.1} parent=59 // pred_region
          %408 = dma.done [#allocation9], 256
        $region76: #{tpu_custom_call.1} parent=59 // pred_fallthru
          _
        // Predicated region
        $region77: #{tpu_custom_call.1} parent=59 // pred_check
          %p409 = pneg %p219
        $region78: #{tpu_custom_call.1} parent=59 // pred_check_branch
          %411 = sbr.rel (%p409) target = $region80
        $region79: #{tpu_custom_call.1} parent=59 // pred_region
          %412 = dma.done [#allocation9], 512
        $region80: #{tpu_custom_call.1} parent=59 // pred_fallthru
          _
        // Predicated region
        $region81: #{tpu_custom_call.1} parent=59 // pred_check
          %p413 = pneg %p240
        $region82: #{tpu_custom_call.1} parent=59 // pred_check_branch
          %415 = sbr.rel (%p413) target = $region84
        $region83: #{tpu_custom_call.1} parent=59 // pred_region
          %416 = dma.done [#allocation12], 512
        $region84: #{tpu_custom_call.1} parent=59 // pred_fallthru
          _
        %s417 = sand.u32 %s38, 1
        %s418 = scalar_lea.sflag [#allocation3], %s417
        %s419 = sand.u32 %s38, 1
        %s420 = smul.addr %s419, 32
        %s421 = scalar_lea.vmem [#allocation2], %s420
        %p422 = pneg %p51
        %p423 = pneg %p48
        %p424 = pneg %p72
        %p425 = pneg %p69
        %p426 = pneg %p93
        %p427 = pneg %p90
        %p428 = pneg %p114
        %p429 = pneg %p111
        %p430 = pneg %p135
        %p431 = pneg %p132
        %p432 = pneg %p156
        %p433 = pneg %p153
        %p434 = pneg %p177
        %p435 = pneg %p174
        %p436 = pneg %p198
        %p437 = pneg %p195
        %p438 = pneg %p219
        %p439 = pneg %p216
        %p440 = pneg %p240
        %p441 = pneg %p237
        %p442 = pneg %p266
        %p443 = pneg %p263
        %s444 = sand.u32 %s253, 1
        %s445 = scalar_lea.sflag [#allocation4], %s444
        %s446 = sand.u32 %s253, 1
        %s447 = smul.addr %s446, 32
        %s448 = scalar_lea.vmem [#allocation13], %s447
        %s449 = smul.u32 4, %s30
        %s450 = smul.u32 4, %s30
        %v451 = vld [vmem:[%s392] sm:$0xff]
        %v452 = vld [vmem:[%s392 + $0x8] sm:$0xff]
        %v453 = vld [vmem:[%s392 + $0x10] sm:$0xff]
        %v454 = vld [vmem:[%s392 + $0x18] sm:$0xff]
        %v455 = vld [vmem:[#allocation7] sm:$0xff]
        %v456 = vld [vmem:[#allocation7 + $0x8] sm:$0xff]
        %v457 = vld [vmem:[#allocation5 + $0x1] sm:$0x1]
        %v459 = vlaneseq
        %v460 = vshrl.u32 %v459, 7
        %v461 = vsub.s32 0, %v460
        %v462 = vrot.slane %v457, %v461
        %468 = vrot.lane.b32.xlu0 %v451, 111
        %v469 = vpop.permute.xlu0 %468
        %470 = vrot.lane.b32.xlu0 %v452, 111
        %v471 = vpop.permute.xlu0 %470
        %472 = vrot.lane.b32.xlu0 %v453, 111
        %v473 = vpop.permute.xlu0 %472
        %474 = vrot.lane.b32.xlu0 %v454, 111
        %v475 = vpop.permute.xlu0 %474
        %vm476 = vcmask 130048
        %v477 = vsel %vm476, %v469, 0
        %v479 = vsel %vm476, %v471, 0
        %v481 = vsel %vm476, %v473, 0
        %v483 = vsel %vm476, %v475, 0
        %485 = vmatprep.subr.mxu0 0.0
        %486 = vmatpush1.msra.mxu0 0.0
        %487 = vmatprep.subr.mxu0 0.0
        %488 = vmatpush1.msra.mxu0 0.0
        %489 = vmatprep.subr.mxu0 0.0
        %490 = vmatpush1.msra.mxu0 0.0
        %491 = vmatprep.subr.mxu0 0.0
        %492 = vmatpush1.msra.mxu0 0.0
        %493 = vmatprep.subr.mxu0 0.0
        %494 = vmatpush1.msra.mxu0 0.0
        %495 = vmatprep.subr.mxu0 0.0
        %496 = vmatpush1.msra.mxu0 0.0
        %497 = vmatprep.subr.mxu0 0.0
        %498 = vmatpush1.msra.mxu0 0.0
        %499 = vmatprep.subr.mxu0 0.0
        %500 = vmatpush1.msra.mxu0 0.0
        %501 = vmatprep.subr.mxu0 0.0
        %502 = vmatpush1.msra.mxu0 0.0
        %503 = vmatprep.subr.mxu0 0.0
        %504 = vmatpush1.msra.mxu0 0.0
        %505 = vmatprep.subr.mxu0 0.0
        %506 = vmatpush1.msra.mxu0 0.0
        %507 = vmatprep.subr.mxu0 0.0
        %508 = vmatpush1.msra.mxu0 0.0
        %509 = vmatprep.subr.mxu0 0.0
        %510 = vmatpush1.msra.mxu0 0.0
        %511 = vmatprep.subr.mxu0 0.0
        %512 = vmatpush1.msra.mxu0 0.0
        %513 = vmatprep.subr.mxu0 0.0
        %514 = vmatpush1.msra.mxu0 %v456
        %515 = vmatprep.subr.mxu0 0.0
        %516 = vmatpush1.msra.mxu0 %v455
        %517 = vmatprep.subr.mxu0 0.0
        %518 = vmatpush2.msra.mxu0 0.0
        %519 = vmatprep.subr.mxu0 0.0
        %520 = vmatpush2.msra.mxu0 0.0
        %521 = vmatprep.subr.mxu0 0.0
        %522 = vmatpush2.msra.mxu0 0.0
        %523 = vmatprep.subr.mxu0 0.0
        %524 = vmatpush2.msra.mxu0 0.0
        %525 = vmatprep.subr.mxu0 0.0
        %526 = vmatpush2.msra.mxu0 0.0
        %527 = vmatprep.subr.mxu0 0.0
        %528 = vmatpush2.msra.mxu0 0.0
        %529 = vmatprep.subr.mxu0 0.0
        %530 = vmatpush2.msra.mxu0 0.0
        %531 = vmatprep.subr.mxu0 0.0
        %532 = vmatpush2.msra.mxu0 0.0
        %533 = vmatprep.subr.mxu0 0.0
        %534 = vmatpush2.msra.mxu0 0.0
        %535 = vmatprep.subr.mxu0 0.0
        %536 = vmatpush2.msra.mxu0 0.0
        %537 = vmatprep.subr.mxu0 0.0
        %538 = vmatpush2.msra.mxu0 0.0
        %539 = vmatprep.subr.mxu0 0.0
        %540 = vmatpush2.msra.mxu0 0.0
        %541 = vmatprep.subr.mxu0 0.0
        %542 = vmatpush2.msra.mxu0 0.0
        %543 = vmatprep.subr.mxu0 0.0
        %544 = vmatpush2.msra.mxu0 0.0
        %545 = vmatprep.subr.mxu0 0.0
        %546 = vmatpush2.msra.mxu0 0.0
        %547 = vmatprep.subr.mxu0 0.0
        %548 = vmatpush2.msra.mxu0 0.0
        %549 = vmatprep.mubr.f32.mxu0 0.0
        %550 = vmatmul.mubr.f32.gmra.mxu0 %v477
        %v551 = vpop.f32.mrf.mxu0
        %v552 = vadd.f32 %v462, %v551
        %v553 = vpop.f32.mrf.mxu0
        %554 = vmatprep.mubr.f32.mxu0 0.0
        %555 = vmatmul.mubr.f32.gmra.mxu0 %v479
        %v556 = vpop.f32.mrf.mxu0
        %v557 = vadd.f32 %v462, %v556
        %v558 = vpop.f32.mrf.mxu0
        %559 = vmatprep.mubr.f32.mxu0 0.0
        %560 = vmatmul.mubr.f32.gmra.mxu0 %v481
        %v561 = vpop.f32.mrf.mxu0
        %v562 = vadd.f32 %v462, %v561
        %v563 = vpop.f32.mrf.mxu0
        %564 = vmatprep.mubr.f32.mxu0 0.0
        %565 = vmatmul.mubr.f32.gmra.mxu0 %v483
        %v566 = vpop.f32.mrf.mxu0
        %v567 = vadd.f32 %v462, %v566
        %v568 = vpop.f32.mrf.mxu0
        %569 = vdwg.mxu0
        %v570 = vmax.f32 %v552, 0.0
        %v571 = vmax.f32 %v557, 0.0
        %v572 = vmax.f32 %v562, 0.0
        %v573 = vmax.f32 %v567, 0.0
        %v574 = vld [vmem:[%s3] sm:$0xff]
        %v575 = vld [vmem:[%s3 + $0x8] sm:$0xff]
        %v576 = vld [vmem:[%s3 + $0x10] sm:$0xff]
        %v577 = vld [vmem:[%s3 + $0x18] sm:$0xff]
        %v578 = vld [vmem:[#allocation5 + $0x2] sm:$0x1]
        %v580 = vlaneseq
        %v581 = vshrl.u32 %v580, 7
        %v582 = vsub.s32 0, %v581
        %v583 = vrot.slane %v578, %v582
        %vm585 = vcmask 261120
        %v587 = vsel %vm585, %v570, 0
        %v590 = vsel %vm585, %v571, 0
        %v593 = vsel %vm585, %v572, 0
        %v596 = vsel %vm585, %v573, 0
        %598 = vmatprep.subr.mxu0 0.0
        %599 = vmatpush1.msra.mxu0 0.0
        %600 = vmatprep.subr.mxu0 0.0
        %601 = vmatpush1.msra.mxu0 0.0
        %602 = vmatprep.subr.mxu0 0.0
        %603 = vmatpush1.msra.mxu0 0.0
        %604 = vmatprep.subr.mxu0 0.0
        %605 = vmatpush1.msra.mxu0 0.0
        %606 = vmatprep.subr.mxu0 0.0
        %607 = vmatpush1.msra.mxu0 0.0
        %608 = vmatprep.subr.mxu0 0.0
        %609 = vmatpush1.msra.mxu0 0.0
        %610 = vmatprep.subr.mxu0 0.0
        %611 = vmatpush1.msra.mxu0 0.0
        %612 = vmatprep.subr.mxu0 0.0
        %613 = vmatpush1.msra.mxu0 0.0
        %614 = vmatprep.subr.mxu0 0.0
        %615 = vmatpush1.msra.mxu0 0.0
        %616 = vmatprep.subr.mxu0 0.0
        %617 = vmatpush1.msra.mxu0 0.0
        %618 = vmatprep.subr.mxu0 0.0
        %619 = vmatpush1.msra.mxu0 0.0
        %620 = vmatprep.subr.mxu0 0.0
        %621 = vmatpush1.msra.mxu0 0.0
        %622 = vmatprep.subr.mxu0 0.0
        %623 = vmatpush1.msra.mxu0 %v577
        %624 = vmatprep.subr.mxu0 0.0
        %625 = vmatpush1.msra.mxu0 %v576
        %626 = vmatprep.subr.mxu0 0.0
        %627 = vmatpush1.msra.mxu0 %v575
        %628 = vmatprep.subr.mxu0 0.0
        %629 = vmatpush1.msra.mxu0 %v574
        %630 = vmatprep.subr.mxu0 0.0
        %631 = vmatpush2.msra.mxu0 0.0
        %632 = vmatprep.subr.mxu0 0.0
        %633 = vmatpush2.msra.mxu0 0.0
        %634 = vmatprep.subr.mxu0 0.0
        %635 = vmatpush2.msra.mxu0 0.0
        %636 = vmatprep.subr.mxu0 0.0
        %637 = vmatpush2.msra.mxu0 0.0
        %638 = vmatprep.subr.mxu0 0.0
        %639 = vmatpush2.msra.mxu0 0.0
        %640 = vmatprep.subr.mxu0 0.0
        %641 = vmatpush2.msra.mxu0 0.0
        %642 = vmatprep.subr.mxu0 0.0
        %643 = vmatpush2.msra.mxu0 0.0
        %644 = vmatprep.subr.mxu0 0.0
        %645 = vmatpush2.msra.mxu0 0.0
        %646 = vmatprep.subr.mxu0 0.0
        %647 = vmatpush2.msra.mxu0 0.0
        %648 = vmatprep.subr.mxu0 0.0
        %649 = vmatpush2.msra.mxu0 0.0
        %650 = vmatprep.subr.mxu0 0.0
        %651 = vmatpush2.msra.mxu0 0.0
        %652 = vmatprep.subr.mxu0 0.0
        %653 = vmatpush2.msra.mxu0 0.0
        %654 = vmatprep.subr.mxu0 0.0
        %655 = vmatpush2.msra.mxu0 0.0
        %656 = vmatprep.subr.mxu0 0.0
        %657 = vmatpush2.msra.mxu0 0.0
        %658 = vmatprep.subr.mxu0 0.0
        %659 = vmatpush2.msra.mxu0 0.0
        %660 = vmatprep.subr.mxu0 0.0
        %661 = vmatpush2.msra.mxu0 0.0
        %662 = vmatprep.mubr.f32.mxu0 0.0
        %663 = vmatmul.mubr.f32.gmra.mxu0 %v587
        %v664 = vpop.f32.mrf.mxu0
        %v665 = vadd.f32 %v583, %v664
        %v666 = vpop.f32.mrf.mxu0
        %667 = vmatprep.mubr.f32.mxu0 0.0
        %668 = vmatmul.mubr.f32.gmra.mxu0 %v590
        %v669 = vpop.f32.mrf.mxu0
        %v670 = vadd.f32 %v583, %v669
        %v671 = vpop.f32.mrf.mxu0
        %672 = vmatprep.mubr.f32.mxu0 0.0
        %673 = vmatmul.mubr.f32.gmra.mxu0 %v593
        %v674 = vpop.f32.mrf.mxu0
        %v675 = vadd.f32 %v583, %v674
        %v676 = vpop.f32.mrf.mxu0
        %677 = vmatprep.mubr.f32.mxu0 0.0
        %678 = vmatmul.mubr.f32.gmra.mxu0 %v596
        %v679 = vpop.f32.mrf.mxu0
        %v680 = vadd.f32 %v583, %v679
        %v681 = vpop.f32.mrf.mxu0
        %682 = vdwg.mxu0
        %v683 = vmax.f32 %v665, 0.0
        %v684 = vmax.f32 %v670, 0.0
        %v685 = vmax.f32 %v675, 0.0
        %v686 = vmax.f32 %v680, 0.0
        %v687 = vld [vmem:[%s4] sm:$0xff]
        %v688 = vld [vmem:[%s4 + $0x8] sm:$0xff]
        %v689 = vld [vmem:[%s4 + $0x10] sm:$0xff]
        %v690 = vld [vmem:[%s4 + $0x18] sm:$0xff]
        %v691 = vld [vmem:[#allocation5 + $0x3] sm:$0x1]
        %v693 = vlaneseq
        %v694 = vshrl.u32 %v693, 7
        %v695 = vsub.s32 0, %v694
        %v696 = vrot.slane %v691, %v695
        %v699 = vsel %vm585, %v683, 0
        %v702 = vsel %vm585, %v684, 0
        %v705 = vsel %vm585, %v685, 0
        %v708 = vsel %vm585, %v686, 0
        %710 = vmatprep.subr.mxu0 0.0
        %711 = vmatpush1.msra.mxu0 0.0
        %712 = vmatprep.subr.mxu0 0.0
        %713 = vmatpush1.msra.mxu0 0.0
        %714 = vmatprep.subr.mxu0 0.0
        %715 = vmatpush1.msra.mxu0 0.0
        %716 = vmatprep.subr.mxu0 0.0
        %717 = vmatpush1.msra.mxu0 0.0
        %718 = vmatprep.subr.mxu0 0.0
        %719 = vmatpush1.msra.mxu0 0.0
        %720 = vmatprep.subr.mxu0 0.0
        %721 = vmatpush1.msra.mxu0 0.0
        %722 = vmatprep.subr.mxu0 0.0
        %723 = vmatpush1.msra.mxu0 0.0
        %724 = vmatprep.subr.mxu0 0.0
        %725 = vmatpush1.msra.mxu0 0.0
        %726 = vmatprep.subr.mxu0 0.0
        %727 = vmatpush1.msra.mxu0 0.0
        %728 = vmatprep.subr.mxu0 0.0
        %729 = vmatpush1.msra.mxu0 0.0
        %730 = vmatprep.subr.mxu0 0.0
        %731 = vmatpush1.msra.mxu0 0.0
        %732 = vmatprep.subr.mxu0 0.0
        %733 = vmatpush1.msra.mxu0 0.0
        %734 = vmatprep.subr.mxu0 0.0
        %735 = vmatpush1.msra.mxu0 %v690
        %736 = vmatprep.subr.mxu0 0.0
        %737 = vmatpush1.msra.mxu0 %v689
        %738 = vmatprep.subr.mxu0 0.0
        %739 = vmatpush1.msra.mxu0 %v688
        %740 = vmatprep.subr.mxu0 0.0
        %741 = vmatpush1.msra.mxu0 %v687
        %742 = vmatprep.subr.mxu0 0.0
        %743 = vmatpush2.msra.mxu0 0.0
        %744 = vmatprep.subr.mxu0 0.0
        %745 = vmatpush2.msra.mxu0 0.0
        %746 = vmatprep.subr.mxu0 0.0
        %747 = vmatpush2.msra.mxu0 0.0
        %748 = vmatprep.subr.mxu0 0.0
        %749 = vmatpush2.msra.mxu0 0.0
        %750 = vmatprep.subr.mxu0 0.0
        %751 = vmatpush2.msra.mxu0 0.0
        %752 = vmatprep.subr.mxu0 0.0
        %753 = vmatpush2.msra.mxu0 0.0
        %754 = vmatprep.subr.mxu0 0.0
        %755 = vmatpush2.msra.mxu0 0.0
        %756 = vmatprep.subr.mxu0 0.0
        %757 = vmatpush2.msra.mxu0 0.0
        %758 = vmatprep.subr.mxu0 0.0
        %759 = vmatpush2.msra.mxu0 0.0
        %760 = vmatprep.subr.mxu0 0.0
        %761 = vmatpush2.msra.mxu0 0.0
        %762 = vmatprep.subr.mxu0 0.0
        %763 = vmatpush2.msra.mxu0 0.0
        %764 = vmatprep.subr.mxu0 0.0
        %765 = vmatpush2.msra.mxu0 0.0
        %766 = vmatprep.subr.mxu0 0.0
        %767 = vmatpush2.msra.mxu0 0.0
        %768 = vmatprep.subr.mxu0 0.0
        %769 = vmatpush2.msra.mxu0 0.0
        %770 = vmatprep.subr.mxu0 0.0
        %771 = vmatpush2.msra.mxu0 0.0
        %772 = vmatprep.subr.mxu0 0.0
        %773 = vmatpush2.msra.mxu0 0.0
        %774 = vmatprep.mubr.f32.mxu0 0.0
        %775 = vmatmul.mubr.f32.gmra.mxu0 %v699
        %v776 = vpop.f32.mrf.mxu0
        %v777 = vadd.f32 %v696, %v776
        %v778 = vpop.f32.mrf.mxu0
        %779 = vmatprep.mubr.f32.mxu0 0.0
        %780 = vmatmul.mubr.f32.gmra.mxu0 %v702
        %v781 = vpop.f32.mrf.mxu0
        %v782 = vadd.f32 %v696, %v781
        %v783 = vpop.f32.mrf.mxu0
        %784 = vmatprep.mubr.f32.mxu0 0.0
        %785 = vmatmul.mubr.f32.gmra.mxu0 %v705
        %v786 = vpop.f32.mrf.mxu0
        %v787 = vadd.f32 %v696, %v786
        %v788 = vpop.f32.mrf.mxu0
        %789 = vmatprep.mubr.f32.mxu0 0.0
        %790 = vmatmul.mubr.f32.gmra.mxu0 %v708
        %v791 = vpop.f32.mrf.mxu0
        %v792 = vadd.f32 %v696, %v791
        %v793 = vpop.f32.mrf.mxu0
        %794 = vdwg.mxu0
        %795 = vst [vmem:[%s448] sm:$0xff] %v777
        %796 = vst [vmem:[%s448 + $0x8] sm:$0xff] %v782
        %797 = vst [vmem:[%s448 + $0x10] sm:$0xff] %v787
        %798 = vst [vmem:[%s448 + $0x18] sm:$0xff] %v792
        %v799 = vld [vmem:[#allocation5] sm:$0x1]
        %800 = vset.pattern.permute.xlu0 16
        %801 = vperm.xlu0 %800, %v451
        %v802 = vpop.permute.xlu0 %801
        %804 = vset.pattern.permute.xlu0 16
        %805 = vperm.xlu0 %804, %v452
        %v806 = vpop.permute.xlu0 %805
        %808 = vset.pattern.permute.xlu0 16
        %809 = vperm.xlu0 %808, %v453
        %v810 = vpop.permute.xlu0 %809
        %812 = vset.pattern.permute.xlu0 16
        %813 = vperm.xlu0 %812, %v454
        %v814 = vpop.permute.xlu0 %813
        %v817 = vlaneseq
        %v818 = vshrl.u32 %v817, 7
        %v819 = vsub.s32 0, %v818
        %v820 = vrot.slane %v799, %v819
        %v822 = vmul.f32 %v802, %v820
        %v823 = vmul.f32 %v806, %v820
        %v824 = vmul.f32 %v810, %v820
        %v825 = vmul.f32 %v814, %v820
        %v826 = vand.u32 2147483647, %v822
        %vm827 = vcmp.le.f32.partialorder %v826, 0.7853982
        %vm828 = vcmp.lt.s32.totalorder %v822, 0
        %v829 = vand.u32 %v822, 2139095040
        %v830 = vshrl.u32 %v829, 23
        %v831 = vsub.s32 %v830, 127
        %v832 = vand.u32 2147483647, %v822
        %v833 = vand.u32 %v832, 8388607
        %v834 = vor.u32 %v833, 8388608
        %v835 = vsub.s32 0, %v834
        %v836 = vadd.s32 %v831, 1
        %vm837 = vcmp.gt.s32.totalorder %v836, 0
        %v838 = vsel %vm837, %v836, 0
        %v839 = vshrl.u32 %v838, 5
        %v840 = vand.u32 %v838, 31
        %v841 = vsub.s32 32, %v840
        %v842 = vshrl.u32 683565275, %v841
        %v843 = vshll.u32 683565275, %v840
        %v844 = vshrl.u32 2475754826, %v841
        %v845 = vor.u32 %v843, %v844
        %v846 = vshll.u32 2475754826, %v840
        %v847 = vshrl.u32 2131351028, %v841
        %v848 = vor.u32 %v846, %v847
        %v849 = vshll.u32 2131351028, %v840
        %v850 = vshrl.u32 2102212464, %v841
        %v851 = vor.u32 %v849, %v850
        %v852 = vshll.u32 2102212464, %v840
        %v853 = vshrl.u32 920167782, %v841
        %v854 = vor.u32 %v852, %v853
        %v855 = vshll.u32 920167782, %v840
        %v856 = vshrl.u32 1326507024, %v841
        %v857 = vor.u32 %v855, %v856
        %vm858 = vcmp.lt.s32.totalorder %v839, 1
        %vm859 = vcmp.lt.s32.totalorder %v839, 2
        %vm860 = vcmp.lt.s32.totalorder %v839, 3
        %vm861 = vcmp.lt.s32.totalorder %v839, 4
        %v862 = vsel %vm858, %v842, %v845
        %v863 = vsel %vm861, %v851, 2102212464
        %v864 = vsel %vm860, %v848, %v863
        %v865 = vsel %vm859, %v862, %v864
        %v866 = vsel %vm858, %v845, %v848
        %v867 = vsel %vm861, %v854, 920167782
        %v868 = vsel %vm860, %v851, %v867
        %v869 = vsel %vm859, %v866, %v868
        %v870 = vsel %vm858, %v848, %v851
        %v871 = vsel %vm861, %v857, 1326507024
        %v872 = vsel %vm860, %v854, %v871
        %v873 = vsel %vm859, %v870, %v872
        %v874 = vshll.u32 %v834, 8
        %v875 = vmul.u32.u64.compose %v874, %v873
        %v876 = vextract.low.u32 %v875
        %v877 = vextract.high.u32 %v875
        %v878 = vmul.u32.u64.compose %v874, %v869
        %v879 = vextract.low.u32 %v878
        %v880 = vextract.high.u32 %v878
        %v881 = vmul.u32 %v874, %v865
        %v882 = vadd.s32 %v877, %v879
        %vm883 = vc.u32 %v877, %v879
        %v884 = vadd.s32 %v880, 1
        %v885 = vsel %vm883, %v884, %v880
        %v886 = vadd.s32 %v881, %v885
        %v887 = vadd.s32 %v886, 536870912
        %v888 = vshrl.u32 %v887, 30
        %v889 = vshll.u32 %v888, 30
        %v890 = vsub.s32 %v886, %v889
        %vm891 = vcmp.lt.s32.totalorder %v890, 0
        %v892 = vsub.s32 0, %v890
        %v893 = vsel %vm891, %v892, %v890
        %v894 = vclz %v893
        %v895 = vsub.s32 %v894, 2
        %vm896 = vcmp.gt.s32.totalorder 0, %v895
        %v897 = vsel %vm896, 0, %v895
        %v898 = vsub.s32 32, %v897
        %v899 = vshll.u32 %v890, %v897
        %v900 = vshrl.u32 %v882, %v898
        %v901 = vor.u32 %v899, %v900
        %v902 = vsub.s32 4294967266, %v897
        %v903 = vadd.s32 %v902, 127
        %v904 = vshll.u32 %v903, 23
        %v905 = vor.u32 4788187, %v904
        %v906 = vand.u32 2147483647, %v905
        %v908 = vcvt.s32.f32 %v901
        %v909 = vmul.f32 %v908, %v906
        %v910 = vxor.u32 %v909, 2147483648
        %v911 = vsel %vm828, %v910, %v909
        %v912 = vsub.s32 4, %v888
        %v913 = vsel %vm828, %v912, %v888
        %v914 = vsel %vm827, %v822, %v911
        %v915 = vsel %vm827, 0, %v913
        %v916 = vcosq.f32.pop %v914
        %v917 = vsinq.f32.pop %v914
        %vm918 = vweird.f32 %v822
        %v919 = vand.u32 %v915, 3
        %vm920 = vcmp.lt.s32.totalorder %v919, 2
        %vm921 = vcmp.eq.s32.totalorder %v919, 0
        %v922 = vxor.u32 %v917, 2147483648
        %v923 = vsel %vm921, %v916, %v922
        %vm924 = vcmp.eq.s32.totalorder %v919, 2
        %v925 = vxor.u32 %v916, 2147483648
        %v926 = vsel %vm924, %v925, %v917
        %v927 = vsel %vm920, %v923, %v926
        %v928 = vsel %vm918, nan, %v927
        %v929 = vand.u32 2147483647, %v823
        %vm930 = vcmp.le.f32.partialorder %v929, 0.7853982
        %vm931 = vcmp.lt.s32.totalorder %v823, 0
        %v932 = vand.u32 %v823, 2139095040
        %v933 = vshrl.u32 %v932, 23
        %v934 = vsub.s32 %v933, 127
        %v935 = vand.u32 2147483647, %v823
        %v936 = vand.u32 %v935, 8388607
        %v937 = vor.u32 %v936, 8388608
        %v938 = vsub.s32 0, %v937
        %v939 = vadd.s32 %v934, 1
        %vm940 = vcmp.gt.s32.totalorder %v939, 0
        %v941 = vsel %vm940, %v939, 0
        %v942 = vshrl.u32 %v941, 5
        %v943 = vand.u32 %v941, 31
        %v944 = vsub.s32 32, %v943
        %v945 = vshrl.u32 683565275, %v944
        %v946 = vshll.u32 683565275, %v943
        %v947 = vshrl.u32 2475754826, %v944
        %v948 = vor.u32 %v946, %v947
        %v949 = vshll.u32 2475754826, %v943
        %v950 = vshrl.u32 2131351028, %v944
        %v951 = vor.u32 %v949, %v950
        %v952 = vshll.u32 2131351028, %v943
        %v953 = vshrl.u32 2102212464, %v944
        %v954 = vor.u32 %v952, %v953
        %v955 = vshll.u32 2102212464, %v943
        %v956 = vshrl.u32 920167782, %v944
        %v957 = vor.u32 %v955, %v956
        %v958 = vshll.u32 920167782, %v943
        %v959 = vshrl.u32 1326507024, %v944
        %v960 = vor.u32 %v958, %v959
        %vm961 = vcmp.lt.s32.totalorder %v942, 1
        %vm962 = vcmp.lt.s32.totalorder %v942, 2
        %vm963 = vcmp.lt.s32.totalorder %v942, 3
        %vm964 = vcmp.lt.s32.totalorder %v942, 4
        %v965 = vsel %vm961, %v945, %v948
        %v966 = vsel %vm964, %v954, 2102212464
        %v967 = vsel %vm963, %v951, %v966
        %v968 = vsel %vm962, %v965, %v967
        %v969 = vsel %vm961, %v948, %v951
        %v970 = vsel %vm964, %v957, 920167782
        %v971 = vsel %vm963, %v954, %v970
        %v972 = vsel %vm962, %v969, %v971
        %v973 = vsel %vm961, %v951, %v954
        %v974 = vsel %vm964, %v960, 1326507024
        %v975 = vsel %vm963, %v957, %v974
        %v976 = vsel %vm962, %v973, %v975
        %v977 = vshll.u32 %v937, 8
        %v978 = vmul.u32.u64.compose %v977, %v976
        %v979 = vextract.low.u32 %v978
        %v980 = vextract.high.u32 %v978
        %v981 = vmul.u32.u64.compose %v977, %v972
        %v982 = vextract.low.u32 %v981
        %v983 = vextract.high.u32 %v981
        %v984 = vmul.u32 %v977, %v968
        %v985 = vadd.s32 %v980, %v982
        %vm986 = vc.u32 %v980, %v982
        %v987 = vadd.s32 %v983, 1
        %v988 = vsel %vm986, %v987, %v983
        %v989 = vadd.s32 %v984, %v988
        %v990 = vadd.s32 %v989, 536870912
        %v991 = vshrl.u32 %v990, 30
        %v992 = vshll.u32 %v991, 30
        %v993 = vsub.s32 %v989, %v992
        %vm994 = vcmp.lt.s32.totalorder %v993, 0
        %v995 = vsub.s32 0, %v993
        %v996 = vsel %vm994, %v995, %v993
        %v997 = vclz %v996
        %v998 = vsub.s32 %v997, 2
        %vm999 = vcmp.gt.s32.totalorder 0, %v998
        %v1000 = vsel %vm999, 0, %v998
        %v1001 = vsub.s32 32, %v1000
        %v1002 = vshll.u32 %v993, %v1000
        %v1003 = vshrl.u32 %v985, %v1001
        %v1004 = vor.u32 %v1002, %v1003
        %v1005 = vsub.s32 4294967266, %v1000
        %v1006 = vadd.s32 %v1005, 127
        %v1007 = vshll.u32 %v1006, 23
        %v1008 = vor.u32 4788187, %v1007
        %v1009 = vand.u32 2147483647, %v1008
        %v1011 = vcvt.s32.f32 %v1004
        %v1012 = vmul.f32 %v1011, %v1009
        %v1013 = vxor.u32 %v1012, 2147483648
        %v1014 = vsel %vm931, %v1013, %v1012
        %v1015 = vsub.s32 4, %v991
        %v1016 = vsel %vm931, %v1015, %v991
        %v1017 = vsel %vm930, %v823, %v1014
        %v1018 = vsel %vm930, 0, %v1016
        %v1019 = vcosq.f32.pop %v1017
        %v1020 = vsinq.f32.pop %v1017
        %vm1021 = vweird.f32 %v823
        %v1022 = vand.u32 %v1018, 3
        %vm1023 = vcmp.lt.s32.totalorder %v1022, 2
        %vm1024 = vcmp.eq.s32.totalorder %v1022, 0
        %v1025 = vxor.u32 %v1020, 2147483648
        %v1026 = vsel %vm1024, %v1019, %v1025
        %vm1027 = vcmp.eq.s32.totalorder %v1022, 2
        %v1028 = vxor.u32 %v1019, 2147483648
        %v1029 = vsel %vm1027, %v1028, %v1020
        %v1030 = vsel %vm1023, %v1026, %v1029
        %v1031 = vsel %vm1021, nan, %v1030
        %v1032 = vand.u32 2147483647, %v824
        %vm1033 = vcmp.le.f32.partialorder %v1032, 0.7853982
        %vm1034 = vcmp.lt.s32.totalorder %v824, 0
        %v1035 = vand.u32 %v824, 2139095040
        %v1036 = vshrl.u32 %v1035, 23
        %v1037 = vsub.s32 %v1036, 127
        %v1038 = vand.u32 2147483647, %v824
        %v1039 = vand.u32 %v1038, 8388607
        %v1040 = vor.u32 %v1039, 8388608
        %v1041 = vsub.s32 0, %v1040
        %v1042 = vadd.s32 %v1037, 1
        %vm1043 = vcmp.gt.s32.totalorder %v1042, 0
        %v1044 = vsel %vm1043, %v1042, 0
        %v1045 = vshrl.u32 %v1044, 5
        %v1046 = vand.u32 %v1044, 31
        %v1047 = vsub.s32 32, %v1046
        %v1048 = vshrl.u32 683565275, %v1047
        %v1049 = vshll.u32 683565275, %v1046
        %v1050 = vshrl.u32 2475754826, %v1047
        %v1051 = vor.u32 %v1049, %v1050
        %v1052 = vshll.u32 2475754826, %v1046
        %v1053 = vshrl.u32 2131351028, %v1047
        %v1054 = vor.u32 %v1052, %v1053
        %v1055 = vshll.u32 2131351028, %v1046
        %v1056 = vshrl.u32 2102212464, %v1047
        %v1057 = vor.u32 %v1055, %v1056
        %v1058 = vshll.u32 2102212464, %v1046
        %v1059 = vshrl.u32 920167782, %v1047
        %v1060 = vor.u32 %v1058, %v1059
        %v1061 = vshll.u32 920167782, %v1046
        %v1062 = vshrl.u32 1326507024, %v1047
        %v1063 = vor.u32 %v1061, %v1062
        %vm1064 = vcmp.lt.s32.totalorder %v1045, 1
        %vm1065 = vcmp.lt.s32.totalorder %v1045, 2
        %vm1066 = vcmp.lt.s32.totalorder %v1045, 3
        %vm1067 = vcmp.lt.s32.totalorder %v1045, 4
        %v1068 = vsel %vm1064, %v1048, %v1051
        %v1069 = vsel %vm1067, %v1057, 2102212464
        %v1070 = vsel %vm1066, %v1054, %v1069
        %v1071 = vsel %vm1065, %v1068, %v1070
        %v1072 = vsel %vm1064, %v1051, %v1054
        %v1073 = vsel %vm1067, %v1060, 920167782
        %v1074 = vsel %vm1066, %v1057, %v1073
        %v1075 = vsel %vm1065, %v1072, %v1074
        %v1076 = vsel %vm1064, %v1054, %v1057
        %v1077 = vsel %vm1067, %v1063, 1326507024
        %v1078 = vsel %vm1066, %v1060, %v1077
        %v1079 = vsel %vm1065, %v1076, %v1078
        %v1080 = vshll.u32 %v1040, 8
        %v1081 = vmul.u32.u64.compose %v1080, %v1079
        %v1082 = vextract.low.u32 %v1081
        %v1083 = vextract.high.u32 %v1081
        %v1084 = vmul.u32.u64.compose %v1080, %v1075
        %v1085 = vextract.low.u32 %v1084
        %v1086 = vextract.high.u32 %v1084
        %v1087 = vmul.u32 %v1080, %v1071
        %v1088 = vadd.s32 %v1083, %v1085
        %vm1089 = vc.u32 %v1083, %v1085
        %v1090 = vadd.s32 %v1086, 1
        %v1091 = vsel %vm1089, %v1090, %v1086
        %v1092 = vadd.s32 %v1087, %v1091
        %v1093 = vadd.s32 %v1092, 536870912
        %v1094 = vshrl.u32 %v1093, 30
        %v1095 = vshll.u32 %v1094, 30
        %v1096 = vsub.s32 %v1092, %v1095
        %vm1097 = vcmp.lt.s32.totalorder %v1096, 0
        %v1098 = vsub.s32 0, %v1096
        %v1099 = vsel %vm1097, %v1098, %v1096
        %v1100 = vclz %v1099
        %v1101 = vsub.s32 %v1100, 2
        %vm1102 = vcmp.gt.s32.totalorder 0, %v1101
        %v1103 = vsel %vm1102, 0, %v1101
        %v1104 = vsub.s32 32, %v1103
        %v1105 = vshll.u32 %v1096, %v1103
        %v1106 = vshrl.u32 %v1088, %v1104
        %v1107 = vor.u32 %v1105, %v1106
        %v1108 = vsub.s32 4294967266, %v1103
        %v1109 = vadd.s32 %v1108, 127
        %v1110 = vshll.u32 %v1109, 23
        %v1111 = vor.u32 4788187, %v1110
        %v1112 = vand.u32 2147483647, %v1111
        %v1114 = vcvt.s32.f32 %v1107
        %v1115 = vmul.f32 %v1114, %v1112
        %v1116 = vxor.u32 %v1115, 2147483648
        %v1117 = vsel %vm1034, %v1116, %v1115
        %v1118 = vsub.s32 4, %v1094
        %v1119 = vsel %vm1034, %v1118, %v1094
        %v1120 = vsel %vm1033, %v824, %v1117
        %v1121 = vsel %vm1033, 0, %v1119
        %v1122 = vcosq.f32.pop %v1120
        %v1123 = vsinq.f32.pop %v1120
        %vm1124 = vweird.f32 %v824
        %v1125 = vand.u32 %v1121, 3
        %vm1126 = vcmp.lt.s32.totalorder %v1125, 2
        %vm1127 = vcmp.eq.s32.totalorder %v1125, 0
        %v1128 = vxor.u32 %v1123, 2147483648
        %v1129 = vsel %vm1127, %v1122, %v1128
        %vm1130 = vcmp.eq.s32.totalorder %v1125, 2
        %v1131 = vxor.u32 %v1122, 2147483648
        %v1132 = vsel %vm1130, %v1131, %v1123
        %v1133 = vsel %vm1126, %v1129, %v1132
        %v1134 = vsel %vm1124, nan, %v1133
        %v1135 = vand.u32 2147483647, %v825
        %vm1136 = vcmp.le.f32.partialorder %v1135, 0.7853982
        %vm1137 = vcmp.lt.s32.totalorder %v825, 0
        %v1138 = vand.u32 %v825, 2139095040
        %v1139 = vshrl.u32 %v1138, 23
        %v1140 = vsub.s32 %v1139, 127
        %v1141 = vand.u32 2147483647, %v825
        %v1142 = vand.u32 %v1141, 8388607
        %v1143 = vor.u32 %v1142, 8388608
        %v1144 = vsub.s32 0, %v1143
        %v1145 = vadd.s32 %v1140, 1
        %vm1146 = vcmp.gt.s32.totalorder %v1145, 0
        %v1147 = vsel %vm1146, %v1145, 0
        %v1148 = vshrl.u32 %v1147, 5
        %v1149 = vand.u32 %v1147, 31
        %v1150 = vsub.s32 32, %v1149
        %v1151 = vshrl.u32 683565275, %v1150
        %v1152 = vshll.u32 683565275, %v1149
        %v1153 = vshrl.u32 2475754826, %v1150
        %v1154 = vor.u32 %v1152, %v1153
        %v1155 = vshll.u32 2475754826, %v1149
        %v1156 = vshrl.u32 2131351028, %v1150
        %v1157 = vor.u32 %v1155, %v1156
        %v1158 = vshll.u32 2131351028, %v1149
        %v1159 = vshrl.u32 2102212464, %v1150
        %v1160 = vor.u32 %v1158, %v1159
        %v1161 = vshll.u32 2102212464, %v1149
        %v1162 = vshrl.u32 920167782, %v1150
        %v1163 = vor.u32 %v1161, %v1162
        %v1164 = vshll.u32 920167782, %v1149
        %v1165 = vshrl.u32 1326507024, %v1150
        %v1166 = vor.u32 %v1164, %v1165
        %vm1167 = vcmp.lt.s32.totalorder %v1148, 1
        %vm1168 = vcmp.lt.s32.totalorder %v1148, 2
        %vm1169 = vcmp.lt.s32.totalorder %v1148, 3
        %vm1170 = vcmp.lt.s32.totalorder %v1148, 4
        %v1171 = vsel %vm1167, %v1151, %v1154
        %v1172 = vsel %vm1170, %v1160, 2102212464
        %v1173 = vsel %vm1169, %v1157, %v1172
        %v1174 = vsel %vm1168, %v1171, %v1173
        %v1175 = vsel %vm1167, %v1154, %v1157
        %v1176 = vsel %vm1170, %v1163, 920167782
        %v1177 = vsel %vm1169, %v1160, %v1176
        %v1178 = vsel %vm1168, %v1175, %v1177
        %v1179 = vsel %vm1167, %v1157, %v1160
        %v1180 = vsel %vm1170, %v1166, 1326507024
        %v1181 = vsel %vm1169, %v1163, %v1180
        %v1182 = vsel %vm1168, %v1179, %v1181
        %v1183 = vshll.u32 %v1143, 8
        %v1184 = vmul.u32.u64.compose %v1183, %v1182
        %v1185 = vextract.low.u32 %v1184
        %v1186 = vextract.high.u32 %v1184
        %v1187 = vmul.u32.u64.compose %v1183, %v1178
        %v1188 = vextract.low.u32 %v1187
        %v1189 = vextract.high.u32 %v1187
        %v1190 = vmul.u32 %v1183, %v1174
        %v1191 = vadd.s32 %v1186, %v1188
        %vm1192 = vc.u32 %v1186, %v1188
        %v1193 = vadd.s32 %v1189, 1
        %v1194 = vsel %vm1192, %v1193, %v1189
        %v1195 = vadd.s32 %v1190, %v1194
        %v1196 = vadd.s32 %v1195, 536870912
        %v1197 = vshrl.u32 %v1196, 30
        %v1198 = vshll.u32 %v1197, 30
        %v1199 = vsub.s32 %v1195, %v1198
        %vm1200 = vcmp.lt.s32.totalorder %v1199, 0
        %v1201 = vsub.s32 0, %v1199
        %v1202 = vsel %vm1200, %v1201, %v1199
        %v1203 = vclz %v1202
        %v1204 = vsub.s32 %v1203, 2
        %vm1205 = vcmp.gt.s32.totalorder 0, %v1204
        %v1206 = vsel %vm1205, 0, %v1204
        %v1207 = vsub.s32 32, %v1206
        %v1208 = vshll.u32 %v1199, %v1206
        %v1209 = vshrl.u32 %v1191, %v1207
        %v1210 = vor.u32 %v1208, %v1209
        %v1211 = vsub.s32 4294967266, %v1206
        %v1212 = vadd.s32 %v1211, 127
        %v1213 = vshll.u32 %v1212, 23
        %v1214 = vor.u32 4788187, %v1213
        %v1215 = vand.u32 2147483647, %v1214
        %v1217 = vcvt.s32.f32 %v1210
        %v1218 = vmul.f32 %v1217, %v1215
        %v1219 = vxor.u32 %v1218, 2147483648
        %v1220 = vsel %vm1137, %v1219, %v1218
        %v1221 = vsub.s32 4, %v1197
        %v1222 = vsel %vm1137, %v1221, %v1197
        %v1223 = vsel %vm1136, %v825, %v1220
        %v1224 = vsel %vm1136, 0, %v1222
        %v1225 = vcosq.f32.pop %v1223
        %v1226 = vsinq.f32.pop %v1223
        %vm1227 = vweird.f32 %v825
        %v1228 = vand.u32 %v1224, 3
        %vm1229 = vcmp.lt.s32.totalorder %v1228, 2
        %vm1230 = vcmp.eq.s32.totalorder %v1228, 0
        %v1231 = vxor.u32 %v1226, 2147483648
        %v1232 = vsel %vm1230, %v1225, %v1231
        %vm1233 = vcmp.eq.s32.totalorder %v1228, 2
        %v1234 = vxor.u32 %v1225, 2147483648
        %v1235 = vsel %vm1233, %v1234, %v1226
        %v1236 = vsel %vm1229, %v1232, %v1235
        %v1237 = vsel %vm1227, nan, %v1236
        %v1238 = vand.u32 2147483647, %v822
        %vm1239 = vcmp.le.f32.partialorder %v1238, 0.7853982
        %vm1240 = vcmp.lt.s32.totalorder %v822, 0
        %v1241 = vand.u32 %v822, 2139095040
        %v1242 = vshrl.u32 %v1241, 23
        %v1243 = vsub.s32 %v1242, 127
        %v1244 = vand.u32 2147483647, %v822
        %v1245 = vand.u32 %v1244, 8388607
        %v1246 = vor.u32 %v1245, 8388608
        %v1247 = vsub.s32 0, %v1246
        %v1248 = vadd.s32 %v1243, 1
        %vm1249 = vcmp.gt.s32.totalorder %v1248, 0
        %v1250 = vsel %vm1249, %v1248, 0
        %v1251 = vshrl.u32 %v1250, 5
        %v1252 = vand.u32 %v1250, 31
        %v1253 = vsub.s32 32, %v1252
        %v1254 = vshrl.u32 683565275, %v1253
        %v1255 = vshll.u32 683565275, %v1252
        %v1256 = vshrl.u32 2475754826, %v1253
        %v1257 = vor.u32 %v1255, %v1256
        %v1258 = vshll.u32 2475754826, %v1252
        %v1259 = vshrl.u32 2131351028, %v1253
        %v1260 = vor.u32 %v1258, %v1259
        %v1261 = vshll.u32 2131351028, %v1252
        %v1262 = vshrl.u32 2102212464, %v1253
        %v1263 = vor.u32 %v1261, %v1262
        %v1264 = vshll.u32 2102212464, %v1252
        %v1265 = vshrl.u32 920167782, %v1253
        %v1266 = vor.u32 %v1264, %v1265
        %v1267 = vshll.u32 920167782, %v1252
        %v1268 = vshrl.u32 1326507024, %v1253
        %v1269 = vor.u32 %v1267, %v1268
        %vm1270 = vcmp.lt.s32.totalorder %v1251, 1
        %vm1271 = vcmp.lt.s32.totalorder %v1251, 2
        %vm1272 = vcmp.lt.s32.totalorder %v1251, 3
        %vm1273 = vcmp.lt.s32.totalorder %v1251, 4
        %v1274 = vsel %vm1270, %v1254, %v1257
        %v1275 = vsel %vm1273, %v1263, 2102212464
        %v1276 = vsel %vm1272, %v1260, %v1275
        %v1277 = vsel %vm1271, %v1274, %v1276
        %v1278 = vsel %vm1270, %v1257, %v1260
        %v1279 = vsel %vm1273, %v1266, 920167782
        %v1280 = vsel %vm1272, %v1263, %v1279
        %v1281 = vsel %vm1271, %v1278, %v1280
        %v1282 = vsel %vm1270, %v1260, %v1263
        %v1283 = vsel %vm1273, %v1269, 1326507024
        %v1284 = vsel %vm1272, %v1266, %v1283
        %v1285 = vsel %vm1271, %v1282, %v1284
        %v1286 = vshll.u32 %v1246, 8
        %v1287 = vmul.u32.u64.compose %v1286, %v1285
        %v1288 = vextract.low.u32 %v1287
        %v1289 = vextract.high.u32 %v1287
        %v1290 = vmul.u32.u64.compose %v1286, %v1281
        %v1291 = vextract.low.u32 %v1290
        %v1292 = vextract.high.u32 %v1290
        %v1293 = vmul.u32 %v1286, %v1277
        %v1294 = vadd.s32 %v1289, %v1291
        %vm1295 = vc.u32 %v1289, %v1291
        %v1296 = vadd.s32 %v1292, 1
        %v1297 = vsel %vm1295, %v1296, %v1292
        %v1298 = vadd.s32 %v1293, %v1297
        %v1299 = vadd.s32 %v1298, 536870912
        %v1300 = vshrl.u32 %v1299, 30
        %v1301 = vshll.u32 %v1300, 30
        %v1302 = vsub.s32 %v1298, %v1301
        %vm1303 = vcmp.lt.s32.totalorder %v1302, 0
        %v1304 = vsub.s32 0, %v1302
        %v1305 = vsel %vm1303, %v1304, %v1302
        %v1306 = vclz %v1305
        %v1307 = vsub.s32 %v1306, 2
        %vm1308 = vcmp.gt.s32.totalorder 0, %v1307
        %v1309 = vsel %vm1308, 0, %v1307
        %v1310 = vsub.s32 32, %v1309
        %v1311 = vshll.u32 %v1302, %v1309
        %v1312 = vshrl.u32 %v1294, %v1310
        %v1313 = vor.u32 %v1311, %v1312
        %v1314 = vsub.s32 4294967266, %v1309
        %v1315 = vadd.s32 %v1314, 127
        %v1316 = vshll.u32 %v1315, 23
        %v1317 = vor.u32 4788187, %v1316
        %v1318 = vand.u32 2147483647, %v1317
        %v1320 = vcvt.s32.f32 %v1313
        %v1321 = vmul.f32 %v1320, %v1318
        %v1322 = vxor.u32 %v1321, 2147483648
        %v1323 = vsel %vm1240, %v1322, %v1321
        %v1324 = vsub.s32 4, %v1300
        %v1325 = vsel %vm1240, %v1324, %v1300
        %v1326 = vsel %vm1239, %v822, %v1323
        %v1327 = vsel %vm1239, 0, %v1325
        %v1328 = vcosq.f32.pop %v1326
        %v1329 = vsinq.f32.pop %v1326
        %vm1330 = vweird.f32 %v822
        %v1331 = vadd.s32 %v1327, 3
        %v1332 = vand.u32 %v1331, 3
        %vm1333 = vcmp.lt.s32.totalorder %v1332, 2
        %vm1334 = vcmp.eq.s32.totalorder %v1332, 0
        %v1335 = vxor.u32 %v1329, 2147483648
        %v1336 = vsel %vm1334, %v1328, %v1335
        %vm1337 = vcmp.eq.s32.totalorder %v1332, 2
        %v1338 = vxor.u32 %v1328, 2147483648
        %v1339 = vsel %vm1337, %v1338, %v1329
        %v1340 = vsel %vm1333, %v1336, %v1339
        %v1341 = vsel %vm1330, nan, %v1340
        %v1342 = vand.u32 2147483647, %v823
        %vm1343 = vcmp.le.f32.partialorder %v1342, 0.7853982
        %vm1344 = vcmp.lt.s32.totalorder %v823, 0
        %v1345 = vand.u32 %v823, 2139095040
        %v1346 = vshrl.u32 %v1345, 23
        %v1347 = vsub.s32 %v1346, 127
        %v1348 = vand.u32 2147483647, %v823
        %v1349 = vand.u32 %v1348, 8388607
        %v1350 = vor.u32 %v1349, 8388608
        %v1351 = vsub.s32 0, %v1350
        %v1352 = vadd.s32 %v1347, 1
        %vm1353 = vcmp.gt.s32.totalorder %v1352, 0
        %v1354 = vsel %vm1353, %v1352, 0
        %v1355 = vshrl.u32 %v1354, 5
        %v1356 = vand.u32 %v1354, 31
        %v1357 = vsub.s32 32, %v1356
        %v1358 = vshrl.u32 683565275, %v1357
        %v1359 = vshll.u32 683565275, %v1356
        %v1360 = vshrl.u32 2475754826, %v1357
        %v1361 = vor.u32 %v1359, %v1360
        %v1362 = vshll.u32 2475754826, %v1356
        %v1363 = vshrl.u32 2131351028, %v1357
        %v1364 = vor.u32 %v1362, %v1363
        %v1365 = vshll.u32 2131351028, %v1356
        %v1366 = vshrl.u32 2102212464, %v1357
        %v1367 = vor.u32 %v1365, %v1366
        %v1368 = vshll.u32 2102212464, %v1356
        %v1369 = vshrl.u32 920167782, %v1357
        %v1370 = vor.u32 %v1368, %v1369
        %v1371 = vshll.u32 920167782, %v1356
        %v1372 = vshrl.u32 1326507024, %v1357
        %v1373 = vor.u32 %v1371, %v1372
        %vm1374 = vcmp.lt.s32.totalorder %v1355, 1
        %vm1375 = vcmp.lt.s32.totalorder %v1355, 2
        %vm1376 = vcmp.lt.s32.totalorder %v1355, 3
        %vm1377 = vcmp.lt.s32.totalorder %v1355, 4
        %v1378 = vsel %vm1374, %v1358, %v1361
        %v1379 = vsel %vm1377, %v1367, 2102212464
        %v1380 = vsel %vm1376, %v1364, %v1379
        %v1381 = vsel %vm1375, %v1378, %v1380
        %v1382 = vsel %vm1374, %v1361, %v1364
        %v1383 = vsel %vm1377, %v1370, 920167782
        %v1384 = vsel %vm1376, %v1367, %v1383
        %v1385 = vsel %vm1375, %v1382, %v1384
        %v1386 = vsel %vm1374, %v1364, %v1367
        %v1387 = vsel %vm1377, %v1373, 1326507024
        %v1388 = vsel %vm1376, %v1370, %v1387
        %v1389 = vsel %vm1375, %v1386, %v1388
        %v1390 = vshll.u32 %v1350, 8
        %v1391 = vmul.u32.u64.compose %v1390, %v1389
        %v1392 = vextract.low.u32 %v1391
        %v1393 = vextract.high.u32 %v1391
        %v1394 = vmul.u32.u64.compose %v1390, %v1385
        %v1395 = vextract.low.u32 %v1394
        %v1396 = vextract.high.u32 %v1394
        %v1397 = vmul.u32 %v1390, %v1381
        %v1398 = vadd.s32 %v1393, %v1395
        %vm1399 = vc.u32 %v1393, %v1395
        %v1400 = vadd.s32 %v1396, 1
        %v1401 = vsel %vm1399, %v1400, %v1396
        %v1402 = vadd.s32 %v1397, %v1401
        %v1403 = vadd.s32 %v1402, 536870912
        %v1404 = vshrl.u32 %v1403, 30
        %v1405 = vshll.u32 %v1404, 30
        %v1406 = vsub.s32 %v1402, %v1405
        %vm1407 = vcmp.lt.s32.totalorder %v1406, 0
        %v1408 = vsub.s32 0, %v1406
        %v1409 = vsel %vm1407, %v1408, %v1406
        %v1410 = vclz %v1409
        %v1411 = vsub.s32 %v1410, 2
        %vm1412 = vcmp.gt.s32.totalorder 0, %v1411
        %v1413 = vsel %vm1412, 0, %v1411
        %v1414 = vsub.s32 32, %v1413
        %v1415 = vshll.u32 %v1406, %v1413
        %v1416 = vshrl.u32 %v1398, %v1414
        %v1417 = vor.u32 %v1415, %v1416
        %v1418 = vsub.s32 4294967266, %v1413
        %v1419 = vadd.s32 %v1418, 127
        %v1420 = vshll.u32 %v1419, 23
        %v1421 = vor.u32 4788187, %v1420
        %v1422 = vand.u32 2147483647, %v1421
        %v1424 = vcvt.s32.f32 %v1417
        %v1425 = vmul.f32 %v1424, %v1422
        %v1426 = vxor.u32 %v1425, 2147483648
        %v1427 = vsel %vm1344, %v1426, %v1425
        %v1428 = vsub.s32 4, %v1404
        %v1429 = vsel %vm1344, %v1428, %v1404
        %v1430 = vsel %vm1343, %v823, %v1427
        %v1431 = vsel %vm1343, 0, %v1429
        %v1432 = vcosq.f32.pop %v1430
        %v1433 = vsinq.f32.pop %v1430
        %vm1434 = vweird.f32 %v823
        %v1435 = vadd.s32 %v1431, 3
        %v1436 = vand.u32 %v1435, 3
        %vm1437 = vcmp.lt.s32.totalorder %v1436, 2
        %vm1438 = vcmp.eq.s32.totalorder %v1436, 0
        %v1439 = vxor.u32 %v1433, 2147483648
        %v1440 = vsel %vm1438, %v1432, %v1439
        %vm1441 = vcmp.eq.s32.totalorder %v1436, 2
        %v1442 = vxor.u32 %v1432, 2147483648
        %v1443 = vsel %vm1441, %v1442, %v1433
        %v1444 = vsel %vm1437, %v1440, %v1443
        %v1445 = vsel %vm1434, nan, %v1444
        %v1446 = vand.u32 2147483647, %v824
        %vm1447 = vcmp.le.f32.partialorder %v1446, 0.7853982
        %vm1448 = vcmp.lt.s32.totalorder %v824, 0
        %v1449 = vand.u32 %v824, 2139095040
        %v1450 = vshrl.u32 %v1449, 23
        %v1451 = vsub.s32 %v1450, 127
        %v1452 = vand.u32 2147483647, %v824
        %v1453 = vand.u32 %v1452, 8388607
        %v1454 = vor.u32 %v1453, 8388608
        %v1455 = vsub.s32 0, %v1454
        %v1456 = vadd.s32 %v1451, 1
        %vm1457 = vcmp.gt.s32.totalorder %v1456, 0
        %v1458 = vsel %vm1457, %v1456, 0
        %v1459 = vshrl.u32 %v1458, 5
        %v1460 = vand.u32 %v1458, 31
        %v1461 = vsub.s32 32, %v1460
        %v1462 = vshrl.u32 683565275, %v1461
        %v1463 = vshll.u32 683565275, %v1460
        %v1464 = vshrl.u32 2475754826, %v1461
        %v1465 = vor.u32 %v1463, %v1464
        %v1466 = vshll.u32 2475754826, %v1460
        %v1467 = vshrl.u32 2131351028, %v1461
        %v1468 = vor.u32 %v1466, %v1467
        %v1469 = vshll.u32 2131351028, %v1460
        %v1470 = vshrl.u32 2102212464, %v1461
        %v1471 = vor.u32 %v1469, %v1470
        %v1472 = vshll.u32 2102212464, %v1460
        %v1473 = vshrl.u32 920167782, %v1461
        %v1474 = vor.u32 %v1472, %v1473
        %v1475 = vshll.u32 920167782, %v1460
        %v1476 = vshrl.u32 1326507024, %v1461
        %v1477 = vor.u32 %v1475, %v1476
        %vm1478 = vcmp.lt.s32.totalorder %v1459, 1
        %vm1479 = vcmp.lt.s32.totalorder %v1459, 2
        %vm1480 = vcmp.lt.s32.totalorder %v1459, 3
        %vm1481 = vcmp.lt.s32.totalorder %v1459, 4
        %v1482 = vsel %vm1478, %v1462, %v1465
        %v1483 = vsel %vm1481, %v1471, 2102212464
        %v1484 = vsel %vm1480, %v1468, %v1483
        %v1485 = vsel %vm1479, %v1482, %v1484
        %v1486 = vsel %vm1478, %v1465, %v1468
        %v1487 = vsel %vm1481, %v1474, 920167782
        %v1488 = vsel %vm1480, %v1471, %v1487
        %v1489 = vsel %vm1479, %v1486, %v1488
        %v1490 = vsel %vm1478, %v1468, %v1471
        %v1491 = vsel %vm1481, %v1477, 1326507024
        %v1492 = vsel %vm1480, %v1474, %v1491
        %v1493 = vsel %vm1479, %v1490, %v1492
        %v1494 = vshll.u32 %v1454, 8
        %v1495 = vmul.u32.u64.compose %v1494, %v1493
        %v1496 = vextract.low.u32 %v1495
        %v1497 = vextract.high.u32 %v1495
        %v1498 = vmul.u32.u64.compose %v1494, %v1489
        %v1499 = vextract.low.u32 %v1498
        %v1500 = vextract.high.u32 %v1498
        %v1501 = vmul.u32 %v1494, %v1485
        %v1502 = vadd.s32 %v1497, %v1499
        %vm1503 = vc.u32 %v1497, %v1499
        %v1504 = vadd.s32 %v1500, 1
        %v1505 = vsel %vm1503, %v1504, %v1500
        %v1506 = vadd.s32 %v1501, %v1505
        %v1507 = vadd.s32 %v1506, 536870912
        %v1508 = vshrl.u32 %v1507, 30
        %v1509 = vshll.u32 %v1508, 30
        %v1510 = vsub.s32 %v1506, %v1509
        %vm1511 = vcmp.lt.s32.totalorder %v1510, 0
        %v1512 = vsub.s32 0, %v1510
        %v1513 = vsel %vm1511, %v1512, %v1510
        %v1514 = vclz %v1513
        %v1515 = vsub.s32 %v1514, 2
        %vm1516 = vcmp.gt.s32.totalorder 0, %v1515
        %v1517 = vsel %vm1516, 0, %v1515
        %v1518 = vsub.s32 32, %v1517
        %v1519 = vshll.u32 %v1510, %v1517
        %v1520 = vshrl.u32 %v1502, %v1518
        %v1521 = vor.u32 %v1519, %v1520
        %v1522 = vsub.s32 4294967266, %v1517
        %v1523 = vadd.s32 %v1522, 127
        %v1524 = vshll.u32 %v1523, 23
        %v1525 = vor.u32 4788187, %v1524
        %v1526 = vand.u32 2147483647, %v1525
        %v1528 = vcvt.s32.f32 %v1521
        %v1529 = vmul.f32 %v1528, %v1526
        %v1530 = vxor.u32 %v1529, 2147483648
        %v1531 = vsel %vm1448, %v1530, %v1529
        %v1532 = vsub.s32 4, %v1508
        %v1533 = vsel %vm1448, %v1532, %v1508
        %v1534 = vsel %vm1447, %v824, %v1531
        %v1535 = vsel %vm1447, 0, %v1533
        %v1536 = vcosq.f32.pop %v1534
        %v1537 = vsinq.f32.pop %v1534
        %vm1538 = vweird.f32 %v824
        %v1539 = vadd.s32 %v1535, 3
        %v1540 = vand.u32 %v1539, 3
        %vm1541 = vcmp.lt.s32.totalorder %v1540, 2
        %vm1542 = vcmp.eq.s32.totalorder %v1540, 0
        %v1543 = vxor.u32 %v1537, 2147483648
        %v1544 = vsel %vm1542, %v1536, %v1543
        %vm1545 = vcmp.eq.s32.totalorder %v1540, 2
        %v1546 = vxor.u32 %v1536, 2147483648
        %v1547 = vsel %vm1545, %v1546, %v1537
        %v1548 = vsel %vm1541, %v1544, %v1547
        %v1549 = vsel %vm1538, nan, %v1548
        %v1550 = vand.u32 2147483647, %v825
        %vm1551 = vcmp.le.f32.partialorder %v1550, 0.7853982
        %vm1552 = vcmp.lt.s32.totalorder %v825, 0
        %v1553 = vand.u32 %v825, 2139095040
        %v1554 = vshrl.u32 %v1553, 23
        %v1555 = vsub.s32 %v1554, 127
        %v1556 = vand.u32 2147483647, %v825
        %v1557 = vand.u32 %v1556, 8388607
        %v1558 = vor.u32 %v1557, 8388608
        %v1559 = vsub.s32 0, %v1558
        %v1560 = vadd.s32 %v1555, 1
        %vm1561 = vcmp.gt.s32.totalorder %v1560, 0
        %v1562 = vsel %vm1561, %v1560, 0
        %v1563 = vshrl.u32 %v1562, 5
        %v1564 = vand.u32 %v1562, 31
        %v1565 = vsub.s32 32, %v1564
        %v1566 = vshrl.u32 683565275, %v1565
        %v1567 = vshll.u32 683565275, %v1564
        %v1568 = vshrl.u32 2475754826, %v1565
        %v1569 = vor.u32 %v1567, %v1568
        %v1570 = vshll.u32 2475754826, %v1564
        %v1571 = vshrl.u32 2131351028, %v1565
        %v1572 = vor.u32 %v1570, %v1571
        %v1573 = vshll.u32 2131351028, %v1564
        %v1574 = vshrl.u32 2102212464, %v1565
        %v1575 = vor.u32 %v1573, %v1574
        %v1576 = vshll.u32 2102212464, %v1564
        %v1577 = vshrl.u32 920167782, %v1565
        %v1578 = vor.u32 %v1576, %v1577
        %v1579 = vshll.u32 920167782, %v1564
        %v1580 = vshrl.u32 1326507024, %v1565
        %v1581 = vor.u32 %v1579, %v1580
        %vm1582 = vcmp.lt.s32.totalorder %v1563, 1
        %vm1583 = vcmp.lt.s32.totalorder %v1563, 2
        %vm1584 = vcmp.lt.s32.totalorder %v1563, 3
        %vm1585 = vcmp.lt.s32.totalorder %v1563, 4
        %v1586 = vsel %vm1582, %v1566, %v1569
        %v1587 = vsel %vm1585, %v1575, 2102212464
        %v1588 = vsel %vm1584, %v1572, %v1587
        %v1589 = vsel %vm1583, %v1586, %v1588
        %v1590 = vsel %vm1582, %v1569, %v1572
        %v1591 = vsel %vm1585, %v1578, 920167782
        %v1592 = vsel %vm1584, %v1575, %v1591
        %v1593 = vsel %vm1583, %v1590, %v1592
        %v1594 = vsel %vm1582, %v1572, %v1575
        %v1595 = vsel %vm1585, %v1581, 1326507024
        %v1596 = vsel %vm1584, %v1578, %v1595
        %v1597 = vsel %vm1583, %v1594, %v1596
        %v1598 = vshll.u32 %v1558, 8
        %v1599 = vmul.u32.u64.compose %v1598, %v1597
        %v1600 = vextract.low.u32 %v1599
        %v1601 = vextract.high.u32 %v1599
        %v1602 = vmul.u32.u64.compose %v1598, %v1593
        %v1603 = vextract.low.u32 %v1602
        %v1604 = vextract.high.u32 %v1602
        %v1605 = vmul.u32 %v1598, %v1589
        %v1606 = vadd.s32 %v1601, %v1603
        %vm1607 = vc.u32 %v1601, %v1603
        %v1608 = vadd.s32 %v1604, 1
        %v1609 = vsel %vm1607, %v1608, %v1604
        %v1610 = vadd.s32 %v1605, %v1609
        %v1611 = vadd.s32 %v1610, 536870912
        %v1612 = vshrl.u32 %v1611, 30
        %v1613 = vshll.u32 %v1612, 30
        %v1614 = vsub.s32 %v1610, %v1613
        %vm1615 = vcmp.lt.s32.totalorder %v1614, 0
        %v1616 = vsub.s32 0, %v1614
        %v1617 = vsel %vm1615, %v1616, %v1614
        %v1618 = vclz %v1617
        %v1619 = vsub.s32 %v1618, 2
        %vm1620 = vcmp.gt.s32.totalorder 0, %v1619
        %v1621 = vsel %vm1620, 0, %v1619
        %v1622 = vsub.s32 32, %v1621
        %v1623 = vshll.u32 %v1614, %v1621
        %v1624 = vshrl.u32 %v1606, %v1622
        %v1625 = vor.u32 %v1623, %v1624
        %v1626 = vsub.s32 4294967266, %v1621
        %v1627 = vadd.s32 %v1626, 127
        %v1628 = vshll.u32 %v1627, 23
        %v1629 = vor.u32 4788187, %v1628
        %v1630 = vand.u32 2147483647, %v1629
        %v1632 = vcvt.s32.f32 %v1625
        %v1633 = vmul.f32 %v1632, %v1630
        %v1634 = vxor.u32 %v1633, 2147483648
        %v1635 = vsel %vm1552, %v1634, %v1633
        %v1636 = vsub.s32 4, %v1612
        %v1637 = vsel %vm1552, %v1636, %v1612
        %v1638 = vsel %vm1551, %v825, %v1635
        %v1639 = vsel %vm1551, 0, %v1637
        %v1640 = vcosq.f32.pop %v1638
        %v1641 = vsinq.f32.pop %v1638
        %vm1642 = vweird.f32 %v825
        %v1643 = vadd.s32 %v1639, 3
        %v1644 = vand.u32 %v1643, 3
        %vm1645 = vcmp.lt.s32.totalorder %v1644, 2
        %vm1646 = vcmp.eq.s32.totalorder %v1644, 0
        %v1647 = vxor.u32 %v1641, 2147483648
        %v1648 = vsel %vm1646, %v1640, %v1647
        %vm1649 = vcmp.eq.s32.totalorder %v1644, 2
        %v1650 = vxor.u32 %v1640, 2147483648
        %v1651 = vsel %vm1649, %v1650, %v1641
        %v1652 = vsel %vm1645, %v1648, %v1651
        %v1653 = vsel %vm1642, nan, %v1652
        %1658 = vrot.lane.b32.xlu0 %v1341, 8
        %v1659 = vpop.permute.xlu0 %1658
        %1660 = vrot.lane.b32.xlu0 %v1445, 8
        %v1661 = vpop.permute.xlu0 %1660
        %1662 = vrot.lane.b32.xlu0 %v1549, 8
        %v1663 = vpop.permute.xlu0 %1662
        %1664 = vrot.lane.b32.xlu0 %v1653, 8
        %v1665 = vpop.permute.xlu0 %1664
        %vm1670 = vcmask 64512
        %v1671 = vsel %vm1670, %v928, %v1659
        %v1672 = vsel %vm1670, %v1031, %v1661
        %v1673 = vsel %vm1670, %v1134, %v1663
        %v1674 = vsel %vm1670, %v1237, %v1665
        %v1675 = vld [vmem:[#allocation8] sm:$0xff]
        %v1676 = vld [vmem:[#allocation8 + $0x8] sm:$0xff]
        %v1677 = vld [vmem:[#allocation5 + $0x4] sm:$0x1]
        %v1679 = vlaneseq
        %v1680 = vshrl.u32 %v1679, 7
        %v1681 = vsub.s32 0, %v1680
        %v1682 = vrot.slane %v1677, %v1681
        %v1685 = vsel %vm476, %v1671, 0
        %v1688 = vsel %vm476, %v1672, 0
        %v1691 = vsel %vm476, %v1673, 0
        %v1694 = vsel %vm476, %v1674, 0
        %1696 = vmatprep.subr.mxu0 0.0
        %1697 = vmatpush1.msra.mxu0 0.0
        %1698 = vmatprep.subr.mxu0 0.0
        %1699 = vmatpush1.msra.mxu0 0.0
        %1700 = vmatprep.subr.mxu0 0.0
        %1701 = vmatpush1.msra.mxu0 0.0
        %1702 = vmatprep.subr.mxu0 0.0
        %1703 = vmatpush1.msra.mxu0 0.0
        %1704 = vmatprep.subr.mxu0 0.0
        %1705 = vmatpush1.msra.mxu0 0.0
        %1706 = vmatprep.subr.mxu0 0.0
        %1707 = vmatpush1.msra.mxu0 0.0
        %1708 = vmatprep.subr.mxu0 0.0
        %1709 = vmatpush1.msra.mxu0 0.0
        %1710 = vmatprep.subr.mxu0 0.0
        %1711 = vmatpush1.msra.mxu0 0.0
        %1712 = vmatprep.subr.mxu0 0.0
        %1713 = vmatpush1.msra.mxu0 0.0
        %1714 = vmatprep.subr.mxu0 0.0
        %1715 = vmatpush1.msra.mxu0 0.0
        %1716 = vmatprep.subr.mxu0 0.0
        %1717 = vmatpush1.msra.mxu0 0.0
        %1718 = vmatprep.subr.mxu0 0.0
        %1719 = vmatpush1.msra.mxu0 0.0
        %1720 = vmatprep.subr.mxu0 0.0
        %1721 = vmatpush1.msra.mxu0 0.0
        %1722 = vmatprep.subr.mxu0 0.0
        %1723 = vmatpush1.msra.mxu0 0.0
        %1724 = vmatprep.subr.mxu0 0.0
        %1725 = vmatpush1.msra.mxu0 %v1676
        %1726 = vmatprep.subr.mxu0 0.0
        %1727 = vmatpush1.msra.mxu0 %v1675
        %1728 = vmatprep.subr.mxu0 0.0
        %1729 = vmatpush2.msra.mxu0 0.0
        %1730 = vmatprep.subr.mxu0 0.0
        %1731 = vmatpush2.msra.mxu0 0.0
        %1732 = vmatprep.subr.mxu0 0.0
        %1733 = vmatpush2.msra.mxu0 0.0
        %1734 = vmatprep.subr.mxu0 0.0
        %1735 = vmatpush2.msra.mxu0 0.0
        %1736 = vmatprep.subr.mxu0 0.0
        %1737 = vmatpush2.msra.mxu0 0.0
        %1738 = vmatprep.subr.mxu0 0.0
        %1739 = vmatpush2.msra.mxu0 0.0
        %1740 = vmatprep.subr.mxu0 0.0
        %1741 = vmatpush2.msra.mxu0 0.0
        %1742 = vmatprep.subr.mxu0 0.0
        %1743 = vmatpush2.msra.mxu0 0.0
        %1744 = vmatprep.subr.mxu0 0.0
        %1745 = vmatpush2.msra.mxu0 0.0
        %1746 = vmatprep.subr.mxu0 0.0
        %1747 = vmatpush2.msra.mxu0 0.0
        %1748 = vmatprep.subr.mxu0 0.0
        %1749 = vmatpush2.msra.mxu0 0.0
        %1750 = vmatprep.subr.mxu0 0.0
        %1751 = vmatpush2.msra.mxu0 0.0
        %1752 = vmatprep.subr.mxu0 0.0
        %1753 = vmatpush2.msra.mxu0 0.0
        %1754 = vmatprep.subr.mxu0 0.0
        %1755 = vmatpush2.msra.mxu0 0.0
        %1756 = vmatprep.subr.mxu0 0.0
        %1757 = vmatpush2.msra.mxu0 0.0
        %1758 = vmatprep.subr.mxu0 0.0
        %1759 = vmatpush2.msra.mxu0 0.0
        %1760 = vmatprep.mubr.f32.mxu0 0.0
        %1761 = vmatmul.mubr.f32.gmra.mxu0 %v1685
        %v1762 = vpop.f32.mrf.mxu0
        %v1763 = vadd.f32 %v1682, %v1762
        %v1764 = vpop.f32.mrf.mxu0
        %1765 = vmatprep.mubr.f32.mxu0 0.0
        %1766 = vmatmul.mubr.f32.gmra.mxu0 %v1688
        %v1767 = vpop.f32.mrf.mxu0
        %v1768 = vadd.f32 %v1682, %v1767
        %v1769 = vpop.f32.mrf.mxu0
        %1770 = vmatprep.mubr.f32.mxu0 0.0
        %1771 = vmatmul.mubr.f32.gmra.mxu0 %v1691
        %v1772 = vpop.f32.mrf.mxu0
        %v1773 = vadd.f32 %v1682, %v1772
        %v1774 = vpop.f32.mrf.mxu0
        %1775 = vmatprep.mubr.f32.mxu0 0.0
        %1776 = vmatmul.mubr.f32.gmra.mxu0 %v1694
        %v1777 = vpop.f32.mrf.mxu0
        %v1778 = vadd.f32 %v1682, %v1777
        %v1779 = vpop.f32.mrf.mxu0
        %1780 = vdwg.mxu0
        %v1781 = vxor.u32 %v1763, 2147483648
        %v1782 = vxor.u32 %v1768, 2147483648
        %v1783 = vxor.u32 %v1773, 2147483648
        %v1784 = vxor.u32 %v1778, 2147483648
        %v1785 = vmul.f32 %v1781, 1.442695
        %v1786 = vpow.pop %v1785
        %v1787 = vmul.f32 %v1782, 1.442695
        %v1788 = vpow.pop %v1787
        %v1789 = vmul.f32 %v1783, 1.442695
        %v1790 = vpow.pop %v1789
        %v1791 = vmul.f32 %v1784, 1.442695
        %v1792 = vpow.pop %v1791
        %v1793 = vadd.f32 %v1786, 1.0
        %v1794 = vadd.f32 %v1788, 1.0
        %v1795 = vadd.f32 %v1790, 1.0
        %v1796 = vadd.f32 %v1792, 1.0
        %v1797 = vrcp.pop %v1793
        %v1798 = vmul.f32 1.0, %v1797
        %v1799 = vrcp.pop %v1794
        %v1800 = vmul.f32 1.0, %v1799
        %v1801 = vrcp.pop %v1795
        %v1802 = vmul.f32 1.0, %v1801
        %v1803 = vrcp.pop %v1796
        %v1804 = vmul.f32 1.0, %v1803
        %v1805 = vmul.f32 %v1763, %v1798
        %v1806 = vmul.f32 %v1768, %v1800
        %v1807 = vmul.f32 %v1773, %v1802
        %v1808 = vmul.f32 %v1778, %v1804
        %v1809 = vld [vmem:[%s6] sm:$0xff]
        %v1810 = vld [vmem:[%s6 + $0x8] sm:$0xff]
        %v1811 = vld [vmem:[%s6 + $0x10] sm:$0xff]
        %v1812 = vld [vmem:[%s6 + $0x18] sm:$0xff]
        %v1813 = vld [vmem:[#allocation5 + $0x5] sm:$0x1]
        %v1815 = vlaneseq
        %v1816 = vshrl.u32 %v1815, 7
        %v1817 = vsub.s32 0, %v1816
        %v1818 = vrot.slane %v1813, %v1817
        %v1821 = vsel %vm585, %v1805, 0
        %v1824 = vsel %vm585, %v1806, 0
        %v1827 = vsel %vm585, %v1807, 0
        %v1830 = vsel %vm585, %v1808, 0
        %1832 = vmatprep.subr.mxu0 0.0
        %1833 = vmatpush1.msra.mxu0 0.0
        %1834 = vmatprep.subr.mxu0 0.0
        %1835 = vmatpush1.msra.mxu0 0.0
        %1836 = vmatprep.subr.mxu0 0.0
        %1837 = vmatpush1.msra.mxu0 0.0
        %1838 = vmatprep.subr.mxu0 0.0
        %1839 = vmatpush1.msra.mxu0 0.0
        %1840 = vmatprep.subr.mxu0 0.0
        %1841 = vmatpush1.msra.mxu0 0.0
        %1842 = vmatprep.subr.mxu0 0.0
        %1843 = vmatpush1.msra.mxu0 0.0
        %1844 = vmatprep.subr.mxu0 0.0
        %1845 = vmatpush1.msra.mxu0 0.0
        %1846 = vmatprep.subr.mxu0 0.0
        %1847 = vmatpush1.msra.mxu0 0.0
        %1848 = vmatprep.subr.mxu0 0.0
        %1849 = vmatpush1.msra.mxu0 0.0
        %1850 = vmatprep.subr.mxu0 0.0
        %1851 = vmatpush1.msra.mxu0 0.0
        %1852 = vmatprep.subr.mxu0 0.0
        %1853 = vmatpush1.msra.mxu0 0.0
        %1854 = vmatprep.subr.mxu0 0.0
        %1855 = vmatpush1.msra.mxu0 0.0
        %1856 = vmatprep.subr.mxu0 0.0
        %1857 = vmatpush1.msra.mxu0 %v1812
        %1858 = vmatprep.subr.mxu0 0.0
        %1859 = vmatpush1.msra.mxu0 %v1811
        %1860 = vmatprep.subr.mxu0 0.0
        %1861 = vmatpush1.msra.mxu0 %v1810
        %1862 = vmatprep.subr.mxu0 0.0
        %1863 = vmatpush1.msra.mxu0 %v1809
        %1864 = vmatprep.subr.mxu0 0.0
        %1865 = vmatpush2.msra.mxu0 0.0
        %1866 = vmatprep.subr.mxu0 0.0
        %1867 = vmatpush2.msra.mxu0 0.0
        %1868 = vmatprep.subr.mxu0 0.0
        %1869 = vmatpush2.msra.mxu0 0.0
        %1870 = vmatprep.subr.mxu0 0.0
        %1871 = vmatpush2.msra.mxu0 0.0
        %1872 = vmatprep.subr.mxu0 0.0
        %1873 = vmatpush2.msra.mxu0 0.0
        %1874 = vmatprep.subr.mxu0 0.0
        %1875 = vmatpush2.msra.mxu0 0.0
        %1876 = vmatprep.subr.mxu0 0.0
        %1877 = vmatpush2.msra.mxu0 0.0
        %1878 = vmatprep.subr.mxu0 0.0
        %1879 = vmatpush2.msra.mxu0 0.0
        %1880 = vmatprep.subr.mxu0 0.0
        %1881 = vmatpush2.msra.mxu0 0.0
        %1882 = vmatprep.subr.mxu0 0.0
        %1883 = vmatpush2.msra.mxu0 0.0
        %1884 = vmatprep.subr.mxu0 0.0
        %1885 = vmatpush2.msra.mxu0 0.0
        %1886 = vmatprep.subr.mxu0 0.0
        %1887 = vmatpush2.msra.mxu0 0.0
        %1888 = vmatprep.subr.mxu0 0.0
        %1889 = vmatpush2.msra.mxu0 0.0
        %1890 = vmatprep.subr.mxu0 0.0
        %1891 = vmatpush2.msra.mxu0 0.0
        %1892 = vmatprep.subr.mxu0 0.0
        %1893 = vmatpush2.msra.mxu0 0.0
        %1894 = vmatprep.subr.mxu0 0.0
        %1895 = vmatpush2.msra.mxu0 0.0
        %1896 = vmatprep.mubr.f32.mxu0 0.0
        %1897 = vmatmul.mubr.f32.gmra.mxu0 %v1821
        %v1898 = vpop.f32.mrf.mxu0
        %v1899 = vadd.f32 %v1818, %v1898
        %v1900 = vpop.f32.mrf.mxu0
        %1901 = vmatprep.mubr.f32.mxu0 0.0
        %1902 = vmatmul.mubr.f32.gmra.mxu0 %v1824
        %v1903 = vpop.f32.mrf.mxu0
        %v1904 = vadd.f32 %v1818, %v1903
        %v1905 = vpop.f32.mrf.mxu0
        %1906 = vmatprep.mubr.f32.mxu0 0.0
        %1907 = vmatmul.mubr.f32.gmra.mxu0 %v1827
        %v1908 = vpop.f32.mrf.mxu0
        %v1909 = vadd.f32 %v1818, %v1908
        %v1910 = vpop.f32.mrf.mxu0
        %1911 = vmatprep.mubr.f32.mxu0 0.0
        %1912 = vmatmul.mubr.f32.gmra.mxu0 %v1830
        %v1913 = vpop.f32.mrf.mxu0
        %v1914 = vadd.f32 %v1818, %v1913
        %v1915 = vpop.f32.mrf.mxu0
        %1916 = vdwg.mxu0
        %v1917 = vld [vmem:[%s448] sm:$0xff]
        %v1918 = vld [vmem:[%s448 + $0x8] sm:$0xff]
        %v1919 = vld [vmem:[%s448 + $0x10] sm:$0xff]
        %v1920 = vld [vmem:[%s448 + $0x18] sm:$0xff]
        %1925 = vrot.lane.b32.xlu0 %v1899, 16
        %v1926 = vpop.permute.xlu0 %1925
        %1927 = vrot.lane.b32.xlu0 %v1904, 16
        %v1928 = vpop.permute.xlu0 %1927
        %1929 = vrot.lane.b32.xlu0 %v1909, 16
        %v1930 = vpop.permute.xlu0 %1929
        %1931 = vrot.lane.b32.xlu0 %v1914, 16
        %v1932 = vpop.permute.xlu0 %1931
        %1941 = vrot.lane.b32.xlu0 %v1917, 32
        %v1942 = vpop.permute.xlu0 %1941
        %1943 = vrot.lane.b32.xlu0 %v1918, 32
        %v1944 = vpop.permute.xlu0 %1943
        %1945 = vrot.lane.b32.xlu0 %v1919, 32
        %v1946 = vpop.permute.xlu0 %1945
        %1947 = vrot.lane.b32.xlu0 %v1920, 32
        %v1948 = vpop.permute.xlu0 %1947
        %v1953 = vsel %vm476, %v451, %v1926
        %v1954 = vsel %vm476, %v452, %v1928
        %v1955 = vsel %vm476, %v453, %v1930
        %v1956 = vsel %vm476, %v454, %v1932
        %vm1957 = vcmask 392192
        %v1958 = vsel %vm1957, %v1953, %v1942
        %v1959 = vsel %vm1957, %v1954, %v1944
        %v1960 = vsel %vm1957, %v1955, %v1946
        %v1961 = vsel %vm1957, %v1956, %v1948
        %v1962 = vld [vmem:[%s7] sm:$0xff]
        %v1963 = vld [vmem:[%s7 + $0x8] sm:$0xff]
        %v1964 = vld [vmem:[%s7 + $0x10] sm:$0xff]
        %v1965 = vld [vmem:[%s7 + $0x18] sm:$0xff]
        %v1966 = vld [vmem:[%s7 + $0x20] sm:$0xff]
        %v1967 = vld [vmem:[%s7 + $0x28] sm:$0xff]
        %v1968 = vld [vmem:[%s7 + $0x30] sm:$0xff]
        %v1969 = vld [vmem:[#allocation5 + $0x6] sm:$0x1]
        %v1971 = vlaneseq
        %v1972 = vshrl.u32 %v1971, 7
        %v1973 = vsub.s32 0, %v1972
        %v1974 = vrot.slane %v1969, %v1973
        %vm1976 = vcmask 457728
        %v1978 = vsel %vm1976, %v1958, 0
        %v1981 = vsel %vm1976, %v1959, 0
        %v1984 = vsel %vm1976, %v1960, 0
        %v1987 = vsel %vm1976, %v1961, 0
        %1989 = vmatprep.subr.mxu0 0.0
        %1990 = vmatpush1.msra.mxu0 0.0
        %1991 = vmatprep.subr.mxu0 0.0
        %1992 = vmatpush1.msra.mxu0 0.0
        %1993 = vmatprep.subr.mxu0 0.0
        %1994 = vmatpush1.msra.mxu0 0.0
        %1995 = vmatprep.subr.mxu0 0.0
        %1996 = vmatpush1.msra.mxu0 0.0
        %1997 = vmatprep.subr.mxu0 0.0
        %1998 = vmatpush1.msra.mxu0 0.0
        %1999 = vmatprep.subr.mxu0 0.0
        %2000 = vmatpush1.msra.mxu0 0.0
        %2001 = vmatprep.subr.mxu0 0.0
        %2002 = vmatpush1.msra.mxu0 0.0
        %2003 = vmatprep.subr.mxu0 0.0
        %2004 = vmatpush1.msra.mxu0 0.0
        %2005 = vmatprep.subr.mxu0 0.0
        %2006 = vmatpush1.msra.mxu0 0.0
        %2007 = vmatprep.subr.mxu0 0.0
        %2008 = vmatpush1.msra.mxu0 %v1968
        %2009 = vmatprep.subr.mxu0 0.0
        %2010 = vmatpush1.msra.mxu0 %v1967
        %2011 = vmatprep.subr.mxu0 0.0
        %2012 = vmatpush1.msra.mxu0 %v1966
        %2013 = vmatprep.subr.mxu0 0.0
        %2014 = vmatpush1.msra.mxu0 %v1965
        %2015 = vmatprep.subr.mxu0 0.0
        %2016 = vmatpush1.msra.mxu0 %v1964
        %2017 = vmatprep.subr.mxu0 0.0
        %2018 = vmatpush1.msra.mxu0 %v1963
        %2019 = vmatprep.subr.mxu0 0.0
        %2020 = vmatpush1.msra.mxu0 %v1962
        %2021 = vmatprep.subr.mxu0 0.0
        %2022 = vmatpush2.msra.mxu0 0.0
        %2023 = vmatprep.subr.mxu0 0.0
        %2024 = vmatpush2.msra.mxu0 0.0
        %2025 = vmatprep.subr.mxu0 0.0
        %2026 = vmatpush2.msra.mxu0 0.0
        %2027 = vmatprep.subr.mxu0 0.0
        %2028 = vmatpush2.msra.mxu0 0.0
        %2029 = vmatprep.subr.mxu0 0.0
        %2030 = vmatpush2.msra.mxu0 0.0
        %2031 = vmatprep.subr.mxu0 0.0
        %2032 = vmatpush2.msra.mxu0 0.0
        %2033 = vmatprep.subr.mxu0 0.0
        %2034 = vmatpush2.msra.mxu0 0.0
        %2035 = vmatprep.subr.mxu0 0.0
        %2036 = vmatpush2.msra.mxu0 0.0
        %2037 = vmatprep.subr.mxu0 0.0
        %2038 = vmatpush2.msra.mxu0 0.0
        %2039 = vmatprep.subr.mxu0 0.0
        %2040 = vmatpush2.msra.mxu0 0.0
        %2041 = vmatprep.subr.mxu0 0.0
        %2042 = vmatpush2.msra.mxu0 0.0
        %2043 = vmatprep.subr.mxu0 0.0
        %2044 = vmatpush2.msra.mxu0 0.0
        %2045 = vmatprep.subr.mxu0 0.0
        %2046 = vmatpush2.msra.mxu0 0.0
        %2047 = vmatprep.subr.mxu0 0.0
        %2048 = vmatpush2.msra.mxu0 0.0
        %2049 = vmatprep.subr.mxu0 0.0
        %2050 = vmatpush2.msra.mxu0 0.0
        %2051 = vmatprep.subr.mxu0 0.0
        %2052 = vmatpush2.msra.mxu0 0.0
        %2053 = vmatprep.mubr.f32.mxu0 0.0
        %2054 = vmatmul.mubr.f32.gmra.mxu0 %v1978
        %v2055 = vpop.f32.mrf.mxu0
        %v2056 = vadd.f32 %v1974, %v2055
        %v2057 = vpop.f32.mrf.mxu0
        %2058 = vmatprep.mubr.f32.mxu0 0.0
        %2059 = vmatmul.mubr.f32.gmra.mxu0 %v1981
        %v2060 = vpop.f32.mrf.mxu0
        %v2061 = vadd.f32 %v1974, %v2060
        %v2062 = vpop.f32.mrf.mxu0
        %2063 = vmatprep.mubr.f32.mxu0 0.0
        %2064 = vmatmul.mubr.f32.gmra.mxu0 %v1984
        %v2065 = vpop.f32.mrf.mxu0
        %v2066 = vadd.f32 %v1974, %v2065
        %v2067 = vpop.f32.mrf.mxu0
        %2068 = vmatprep.mubr.f32.mxu0 0.0
        %2069 = vmatmul.mubr.f32.gmra.mxu0 %v1987
        %v2070 = vpop.f32.mrf.mxu0
        %v2071 = vadd.f32 %v1974, %v2070
        %v2072 = vpop.f32.mrf.mxu0
        %2073 = vdwg.mxu0
        %v2074 = vmax.f32 %v2056, 0.0
        %v2075 = vmax.f32 %v2061, 0.0
        %v2076 = vmax.f32 %v2066, 0.0
        %v2077 = vmax.f32 %v2071, 0.0
        %v2078 = vld [vmem:[#allocation10] sm:$0xff]
        %v2079 = vld [vmem:[#allocation10 + $0x8] sm:$0xff]
        %v2080 = vld [vmem:[#allocation10 + $0x10] sm:$0xff]
        %v2081 = vld [vmem:[#allocation10 + $0x18] sm:$0xff]
        %v2082 = vld [vmem:[#allocation5 + $0x7] sm:$0x1]
        %v2084 = vlaneseq
        %v2085 = vshrl.u32 %v2084, 7
        %v2086 = vsub.s32 0, %v2085
        %v2087 = vrot.slane %v2082, %v2086
        %v2090 = vsel %vm585, %v2074, 0
        %v2093 = vsel %vm585, %v2075, 0
        %v2096 = vsel %vm585, %v2076, 0
        %v2099 = vsel %vm585, %v2077, 0
        %2101 = vmatprep.subr.mxu0 0.0
        %2102 = vmatpush1.msra.mxu0 0.0
        %2103 = vmatprep.subr.mxu0 0.0
        %2104 = vmatpush1.msra.mxu0 0.0
        %2105 = vmatprep.subr.mxu0 0.0
        %2106 = vmatpush1.msra.mxu0 0.0
        %2107 = vmatprep.subr.mxu0 0.0
        %2108 = vmatpush1.msra.mxu0 0.0
        %2109 = vmatprep.subr.mxu0 0.0
        %2110 = vmatpush1.msra.mxu0 0.0
        %2111 = vmatprep.subr.mxu0 0.0
        %2112 = vmatpush1.msra.mxu0 0.0
        %2113 = vmatprep.subr.mxu0 0.0
        %2114 = vmatpush1.msra.mxu0 0.0
        %2115 = vmatprep.subr.mxu0 0.0
        %2116 = vmatpush1.msra.mxu0 0.0
        %2117 = vmatprep.subr.mxu0 0.0
        %2118 = vmatpush1.msra.mxu0 0.0
        %2119 = vmatprep.subr.mxu0 0.0
        %2120 = vmatpush1.msra.mxu0 0.0
        %2121 = vmatprep.subr.mxu0 0.0
        %2122 = vmatpush1.msra.mxu0 0.0
        %2123 = vmatprep.subr.mxu0 0.0
        %2124 = vmatpush1.msra.mxu0 0.0
        %2125 = vmatprep.subr.mxu0 0.0
        %2126 = vmatpush1.msra.mxu0 %v2081
        %2127 = vmatprep.subr.mxu0 0.0
        %2128 = vmatpush1.msra.mxu0 %v2080
        %2129 = vmatprep.subr.mxu0 0.0
        %2130 = vmatpush1.msra.mxu0 %v2079
        %2131 = vmatprep.subr.mxu0 0.0
        %2132 = vmatpush1.msra.mxu0 %v2078
        %2133 = vmatprep.subr.mxu0 0.0
        %2134 = vmatpush2.msra.mxu0 0.0
        %2135 = vmatprep.subr.mxu0 0.0
        %2136 = vmatpush2.msra.mxu0 0.0
        %2137 = vmatprep.subr.mxu0 0.0
        %2138 = vmatpush2.msra.mxu0 0.0
        %2139 = vmatprep.subr.mxu0 0.0
        %2140 = vmatpush2.msra.mxu0 0.0
        %2141 = vmatprep.subr.mxu0 0.0
        %2142 = vmatpush2.msra.mxu0 0.0
        %2143 = vmatprep.subr.mxu0 0.0
        %2144 = vmatpush2.msra.mxu0 0.0
        %2145 = vmatprep.subr.mxu0 0.0
        %2146 = vmatpush2.msra.mxu0 0.0
        %2147 = vmatprep.subr.mxu0 0.0
        %2148 = vmatpush2.msra.mxu0 0.0
        %2149 = vmatprep.subr.mxu0 0.0
        %2150 = vmatpush2.msra.mxu0 0.0
        %2151 = vmatprep.subr.mxu0 0.0
        %2152 = vmatpush2.msra.mxu0 0.0
        %2153 = vmatprep.subr.mxu0 0.0
        %2154 = vmatpush2.msra.mxu0 0.0
        %2155 = vmatprep.subr.mxu0 0.0
        %2156 = vmatpush2.msra.mxu0 0.0
        %2157 = vmatprep.subr.mxu0 0.0
        %2158 = vmatpush2.msra.mxu0 0.0
        %2159 = vmatprep.subr.mxu0 0.0
        %2160 = vmatpush2.msra.mxu0 0.0
        %2161 = vmatprep.subr.mxu0 0.0
        %2162 = vmatpush2.msra.mxu0 0.0
        %2163 = vmatprep.subr.mxu0 0.0
        %2164 = vmatpush2.msra.mxu0 0.0
        %2165 = vmatprep.mubr.f32.mxu0 0.0
        %2166 = vmatmul.mubr.f32.gmra.mxu0 %v2090
        %v2167 = vpop.f32.mrf.mxu0
        %v2168 = vadd.f32 %v2087, %v2167
        %v2169 = vpop.f32.mrf.mxu0
        %2170 = vmatprep.mubr.f32.mxu0 0.0
        %2171 = vmatmul.mubr.f32.gmra.mxu0 %v2093
        %v2172 = vpop.f32.mrf.mxu0
        %v2173 = vadd.f32 %v2087, %v2172
        %v2174 = vpop.f32.mrf.mxu0
        %2175 = vmatprep.mubr.f32.mxu0 0.0
        %2176 = vmatmul.mubr.f32.gmra.mxu0 %v2096
        %v2177 = vpop.f32.mrf.mxu0
        %v2178 = vadd.f32 %v2087, %v2177
        %v2179 = vpop.f32.mrf.mxu0
        %2180 = vmatprep.mubr.f32.mxu0 0.0
        %2181 = vmatmul.mubr.f32.gmra.mxu0 %v2099
        %v2182 = vpop.f32.mrf.mxu0
        %v2183 = vadd.f32 %v2087, %v2182
        %v2184 = vpop.f32.mrf.mxu0
        %2185 = vdwg.mxu0
        %v2186 = vmax.f32 %v2168, 0.0
        %v2187 = vmax.f32 %v2173, 0.0
        %v2188 = vmax.f32 %v2178, 0.0
        %v2189 = vmax.f32 %v2183, 0.0
        %v2190 = vld [vmem:[#allocation11] sm:$0xff]
        %v2191 = vld [vmem:[#allocation11 + $0x8] sm:$0xff]
        %v2192 = vld [vmem:[#allocation11 + $0x10] sm:$0xff]
        %v2193 = vld [vmem:[#allocation11 + $0x18] sm:$0xff]
        %v2195 = vsel %vm585, %v2186, 0
        %v2198 = vsel %vm585, %v2187, 0
        %v2201 = vsel %vm585, %v2188, 0
        %v2204 = vsel %vm585, %v2189, 0
        %2206 = vmatprep.subr.mxu0 0.0
        %2207 = vmatpush1.msra.mxu0 0.0
        %2208 = vmatprep.subr.mxu0 0.0
        %2209 = vmatpush1.msra.mxu0 0.0
        %2210 = vmatprep.subr.mxu0 0.0
        %2211 = vmatpush1.msra.mxu0 0.0
        %2212 = vmatprep.subr.mxu0 0.0
        %2213 = vmatpush1.msra.mxu0 0.0
        %2214 = vmatprep.subr.mxu0 0.0
        %2215 = vmatpush1.msra.mxu0 0.0
        %2216 = vmatprep.subr.mxu0 0.0
        %2217 = vmatpush1.msra.mxu0 0.0
        %2218 = vmatprep.subr.mxu0 0.0
        %2219 = vmatpush1.msra.mxu0 0.0
        %2220 = vmatprep.subr.mxu0 0.0
        %2221 = vmatpush1.msra.mxu0 0.0
        %2222 = vmatprep.subr.mxu0 0.0
        %2223 = vmatpush1.msra.mxu0 0.0
        %2224 = vmatprep.subr.mxu0 0.0
        %2225 = vmatpush1.msra.mxu0 0.0
        %2226 = vmatprep.subr.mxu0 0.0
        %2227 = vmatpush1.msra.mxu0 0.0
        %2228 = vmatprep.subr.mxu0 0.0
        %2229 = vmatpush1.msra.mxu0 0.0
        %2230 = vmatprep.subr.mxu0 0.0
        %2231 = vmatpush1.msra.mxu0 %v2193
        %2232 = vmatprep.subr.mxu0 0.0
        %2233 = vmatpush1.msra.mxu0 %v2192
        %2234 = vmatprep.subr.mxu0 0.0
        %2235 = vmatpush1.msra.mxu0 %v2191
        %2236 = vmatprep.subr.mxu0 0.0
        %2237 = vmatpush1.msra.mxu0 %v2190
        %2238 = vmatprep.subr.mxu0 0.0
        %2239 = vmatpush2.msra.mxu0 0.0
        %2240 = vmatprep.subr.mxu0 0.0
        %2241 = vmatpush2.msra.mxu0 0.0
        %2242 = vmatprep.subr.mxu0 0.0
        %2243 = vmatpush2.msra.mxu0 0.0
        %2244 = vmatprep.subr.mxu0 0.0
        %2245 = vmatpush2.msra.mxu0 0.0
        %2246 = vmatprep.subr.mxu0 0.0
        %2247 = vmatpush2.msra.mxu0 0.0
        %2248 = vmatprep.subr.mxu0 0.0
        %2249 = vmatpush2.msra.mxu0 0.0
        %2250 = vmatprep.subr.mxu0 0.0
        %2251 = vmatpush2.msra.mxu0 0.0
        %2252 = vmatprep.subr.mxu0 0.0
        %2253 = vmatpush2.msra.mxu0 0.0
        %2254 = vmatprep.subr.mxu0 0.0
        %2255 = vmatpush2.msra.mxu0 0.0
        %2256 = vmatprep.subr.mxu0 0.0
        %2257 = vmatpush2.msra.mxu0 0.0
        %2258 = vmatprep.subr.mxu0 0.0
        %2259 = vmatpush2.msra.mxu0 0.0
        %2260 = vmatprep.subr.mxu0 0.0
        %2261 = vmatpush2.msra.mxu0 0.0
        %2262 = vmatprep.subr.mxu0 0.0
        %2263 = vmatpush2.msra.mxu0 0.0
        %2264 = vmatprep.subr.mxu0 0.0
        %2265 = vmatpush2.msra.mxu0 0.0
        %2266 = vmatprep.subr.mxu0 0.0
        %2267 = vmatpush2.msra.mxu0 0.0
        %2268 = vmatprep.subr.mxu0 0.0
        %2269 = vmatpush2.msra.mxu0 0.0
        %2270 = vmatprep.mubr.f32.mxu0 0.0
        %2271 = vmatmul.mubr.f32.gmra.mxu0 %v2195
        %v2272 = vpop.f32.mrf.mxu0
        %v2273 = vadd.f32 0.0, %v2272
        %v2274 = vpop.f32.mrf.mxu0
        %2275 = vmatprep.mubr.f32.mxu0 0.0
        %2276 = vmatmul.mubr.f32.gmra.mxu0 %v2198
        %v2277 = vpop.f32.mrf.mxu0
        %v2278 = vadd.f32 0.0, %v2277
        %v2279 = vpop.f32.mrf.mxu0
        %2280 = vmatprep.mubr.f32.mxu0 0.0
        %2281 = vmatmul.mubr.f32.gmra.mxu0 %v2201
        %v2282 = vpop.f32.mrf.mxu0
        %v2283 = vadd.f32 0.0, %v2282
        %v2284 = vpop.f32.mrf.mxu0
        %2285 = vmatprep.mubr.f32.mxu0 0.0
        %2286 = vmatmul.mubr.f32.gmra.mxu0 %v2204
        %v2287 = vpop.f32.mrf.mxu0
        %v2288 = vadd.f32 0.0, %v2287
        %v2289 = vpop.f32.mrf.mxu0
        %2290 = vdwg.mxu0
        %v2291 = vadd.f32 %v1917, %v2273
        %v2292 = vadd.f32 %v1918, %v2278
        %v2293 = vadd.f32 %v1919, %v2283
        %v2294 = vadd.f32 %v1920, %v2288
        %v2295 = vld [vmem:[#allocation5 + $0x8] sm:$0x1]
        %v2297 = vlaneseq
        %v2298 = vshrl.u32 %v2297, 7
        %v2299 = vsub.s32 0, %v2298
        %v2300 = vrot.slane %v2295, %v2299
        %v2302 = vadd.f32 %v2291, %v2300
        %v2303 = vadd.f32 %v2292, %v2300
        %v2304 = vadd.f32 %v2293, %v2300
        %v2305 = vadd.f32 %v2294, %v2300
        %2306 = vst [vmem:[%s448] sm:$0xff] %v2302
        %2307 = vst [vmem:[%s448 + $0x8] sm:$0xff] %v2303
        %2308 = vst [vmem:[%s448 + $0x10] sm:$0xff] %v2304
        %2309 = vst [vmem:[%s448 + $0x18] sm:$0xff] %v2305
        %s2310 = sand.u32 %s253, 1
        %s2311 = scalar_lea.sflag [#allocation4], %s2310
        %s2312 = sand.u32 %s253, 1
        %s2313 = smul.addr %s2312, 32
        %s2314 = scalar_lea.vmem [#allocation13], %s2313
        // Predicated region
        $region85: #{tpu_custom_call.1} parent=59 // pred_check
          %p2315 = pneg %p263
        $region86: #{tpu_custom_call.1} parent=59 // pred_check_branch
          %2317 = sbr.rel (%p2315) target = $region88
        $region87: #{tpu_custom_call.1} parent=59 // pred_region
          %s2318 = smul.u32 4, %s30
          %s2320 = ssub.s32 512, 512
          %2321 = vsyncadd %s2311, %s2320
          %s2322 = smul.addr %s2318, 128
          %s2323 = scalar_lea.hbm %s10, %s2322
          %s2324 = sshll.u32 %s2314, 4
          %s2325 = int_to_ptr.vmem [resolvable:$true] %s2324
          %2330 = dma.vmem_to_hbm [thread:$0]  %s2325, 512, %s2323, %s2311, 128, 128, 8
        $region88: #{tpu_custom_call.1} parent=59 // pred_fallthru
          _
      $region60: #{tpu_custom_call.1} parent=5 // pred_fallthru
        _
      %p2331 = scmp.le.s32.totalorder 2, %s25
      // Predicated region
      $region89: #{tpu_custom_call.1} parent=5 // pred_check
        %p2332 = pneg %p2331
      $region90: #{tpu_custom_call.1} parent=5 // pred_check_branch
        %2334 = sbr.rel (%p2332) target = $region92
      $region91: #{tpu_custom_call.1} parent=5 // pred_region
        %s2335 = ssub.s32 %s25, 2
        // Predicated region
        $region93: #{tpu_custom_call.1} parent=91 // pred_check
          %p2336 = pneg %p269
        $region94: #{tpu_custom_call.1} parent=91 // pred_check_branch
          %2338 = sbr.rel (%p2336) target = $region96
        $region95: #{tpu_custom_call.1} parent=91 // pred_region
          %s2339 = sand.u32 %s254, 1
          %s2340 = scalar_lea.sflag [#allocation4], %s2339
          %s2341 = sand.u32 %s254, 1
          %s2342 = smul.addr %s2341, 32
          %s2343 = scalar_lea.vmem [#allocation13], %s2342
          %2344 = dma.done %s2340, 512
        $region96: #{tpu_custom_call.1} parent=91 // pred_fallthru
          _
      $region92: #{tpu_custom_call.1} parent=5 // pred_fallthru
        _
    $region6: #{tpu_custom_call.1} parent=1 // loop_footer
      %s29 = sadd.s32 1, %s25
    $region7: #{tpu_custom_call.1} parent=1 // loop_footer_branch
      %24 = sbr.rel target = $region3
    $region8: #{tpu_custom_call.1} parent=1 // loop_exit
      _
    %2345 = vsyncpa [#allocation3], 1
    %s2346 = scalar_lea.sflag [#allocation3], 1
    %2347 = vsyncpa %s2346, 1
    %2348 = vsyncpa [#allocation6], 1
    %2349 = vsyncpa [#allocation9], 1
    %2350 = vsyncpa [#allocation12], 1
    %2351 = vsyncpa [#allocation4], 1
    %s2352 = scalar_lea.sflag [#allocation4], 1
    %2353 = vsyncpa %s2352, 1

</llo_original>
